<compile_context>
chip_gen: v6e
topology: v6e:2x2x1
jax: 0.10.0
libtpu: 0.0.40
codegen_flags: <defaults>
</compile_context>

<pallas_src>
import jax
import jax.numpy as jnp
from jax import lax
from jax.experimental import pallas as pl
from jax.experimental.pallas import tpu as pltpu


GATE_PITCH = 128  # lane pitch per gate (one full vreg lane tile per gate)


# -----------------------------------------------------------------------------
# Kernel: full GRU encoder over a token sequence in a single invocation.
# -----------------------------------------------------------------------------
def gru_seq_kernel(tok_ref,    # VMEM (T, 1) int32   token ids
                   emb_ref,    # VMEM (V, H) f32     embedding table (resident)
                   h0_ref,     # VMEM (1, GP) f32    initial hidden (zero-padded)
                   wi_ref,     # VMEM (H, 3*GP) f32  input weights, gate-tiled [r|z|n]
                   wh_ref,     # VMEM (GP, 3*GP) f32 hidden weights, gate-tiled
                   bi_ref,     # VMEM (1, 3*GP) f32  b_i (+ b_h folded for r/z gates)
                   bhn_ref,    # VMEM (1, GP) f32    b_hn (n gate hidden bias)
                   out_ref,    # VMEM (T, GP) f32    per-step hidden states (padded)
                   gi_ref):    # scratch VMEM (T, 3*GP) f32
    T, GP = out_ref.shape
    V, H = emb_ref.shape

    # ---- Non-recurrent prologue (runs once per sequence) --------------------
    # Embedding gather for ALL timesteps via a one-hot (T,V)@(V,H) MXU matmul
    # (no dynamic VMEM row indexing; fine for small character-level vocabs).
    col = lax.broadcasted_iota(jnp.int32, (T, V), 1)
    onehot = (col == tok_ref[...]).astype(jnp.float32)          # (T, V)
    x_all = jnp.dot(onehot, emb_ref[...],
                    preferred_element_type=jnp.float32)          # (T, H)

    # Input projection for ALL timesteps in one matmul; gate order [r|z|n],
    # each gate aligned to its own 128-lane tile.  b_hr/b_hz are pre-folded
    # into bi_ref, so the recurrent path needs no bias for r/z.
    gi_ref[...] = (jnp.dot(x_all, wi_ref[...],
                           preferred_element_type=jnp.float32)
                   + bi_ref[...])                                # (T, 3*GP)

    bhn = bhn_ref[...]                                           # (1, GP)

    # ---- Serial recurrence: only the h-path matmul remains per step ---------
    def step(t, h):
        gi = gi_ref[pl.ds(t, 1), :]                              # (1, 3*GP)
        gh = jnp.dot(h, wh_ref[...],
                     preferred_element_type=jnp.float32)         # (1, 3*GP)
        r = jax.nn.sigmoid(gi[:, 0 * GP:1 * GP] + gh[:, 0 * GP:1 * GP])
        z = jax.nn.sigmoid(gi[:, 1 * GP:2 * GP] + gh[:, 1 * GP:2 * GP])
        n = jnp.tanh(gi[:, 2 * GP:3 * GP] + r * (gh[:, 2 * GP:3 * GP] + bhn))
        h_new = (1.0 - z) * n + z * h                            # (1, GP)
        out_ref[pl.ds(t, 1), :] = h_new       # stays in VMEM; one dense HBM DMA at end
        return h_new

    lax.fori_loop(0, T, step, h0_ref[...].astype(jnp.float32), unroll=True)


# -----------------------------------------------------------------------------
# Wrapper: one pallas_call for the entire sequence.
# -----------------------------------------------------------------------------
def encode_sequence_pallas(tokens, h0, prepped):
    """tokens: (T,) int32 ; h0: (1, H) f32 ; prepped: dict from prepare_params.

    Returns (outputs (T, 1, H), final_hidden (1, H)) — same values torch.nn.GRU
    would produce for this token sequence with batch=1.
    """
    T = int(tokens.shape[0])
    H, GP = prepped["H"], prepped["GP"]
    V = prepped["embedding"].shape[0]

    tok2d = tokens.reshape(T, 1).astype(jnp.int32)
    h0_pad = jnp.zeros((1, GP), jnp.float32).at[:, :H].set(
        h0.reshape(1, H).astype(jnp.float32))

    out_pad = pl.pallas_call(
        gru_seq_kernel,
        out_shape=jax.ShapeDtypeStruct((T, GP), jnp.float32),
        grid=(1,),
        in_specs=[
            pl.BlockSpec((T, 1), lambda i: (0, 0)),          # token ids
            pl.BlockSpec((V, H), lambda i: (0, 0)),          # embedding table
            pl.BlockSpec((1, GP), lambda i: (0, 0)),         # h0 (padded)
            pl.BlockSpec((H, 3 * GP), lambda i: (0, 0)),     # Wi (gate-tiled)
            pl.BlockSpec((GP, 3 * GP), lambda i: (0, 0)),    # Wh (gate-tiled)
            pl.BlockSpec((1, 3 * GP), lambda i: (0, 0)),     # folded input bias
            pl.BlockSpec((1, GP), lambda i: (0, 0)),         # b_hn
        ],
        out_specs=pl.BlockSpec((T, GP), lambda i: (0, 0)),
        scratch_shapes=[pltpu.VMEM((T, 3 * GP), jnp.float32)],
        compiler_params=pltpu.CompilerParams(
            dimension_semantics=("arbitrary",)),
    )(tok2d, prepped["embedding"], h0_pad,
      prepped["wi"], prepped["wh"], prepped["bi"], prepped["bhn"])

    out_seq = out_pad[:, :H].reshape(T, 1, H)
    h_fin = out_pad[T - 1, :H].reshape(1, H)
    return out_seq, h_fin


# -----------------------------------------------------------------------------
# One-time parameter preparation (hoisted out of the per-call path).
# -----------------------------------------------------------------------------
def prepare_params(params):
    H = params["embedding"].shape[1]
    GP = ((max(H, 1) + GATE_PITCH - 1) // GATE_PITCH) * GATE_PITCH

    wi_t = jnp.transpose(params["weight_ih"]).astype(jnp.float32)   # (H, 3H) [r|z|n]
    wh_t = jnp.transpose(params["weight_hh"]).astype(jnp.float32)   # (H, 3H)
    bi = params["bias_ih"].astype(jnp.float32)
    bh = params["bias_hh"].astype(jnp.float32)

    wi_pad = jnp.zeros((H, 3 * GP), jnp.float32)
    wh_pad = jnp.zeros((GP, 3 * GP), jnp.float32)
    bi_fold = jnp.zeros((1, 3 * GP), jnp.float32)
    bhn_pad = jnp.zeros((1, GP), jnp.float32)
    for g in range(3):
        wi_pad = wi_pad.at[:, g * GP:g * GP + H].set(wi_t[:, g * H:(g + 1) * H])
        wh_pad = wh_pad.at[:H, g * GP:g * GP + H].set(wh_t[:, g * H:(g + 1) * H])
    # Fold hidden-side biases for r/z into the (non-recurrent) input bias;
    # keep b_hn separate: it lives inside r * (Wh_n h + b_hn).
    bi_fold = bi_fold.at[0, 0 * GP:0 * GP + H].set(bi[0:H] + bh[0:H])
    bi_fold = bi_fold.at[0, 1 * GP:1 * GP + H].set(bi[H:2 * H] + bh[H:2 * H])
    bi_fold = bi_fold.at[0, 2 * GP:2 * GP + H].set(bi[2 * H:3 * H])
    bhn_pad = bhn_pad.at[0, :H].set(bh[2 * H:3 * H])

    return dict(embedding=params["embedding"].astype(jnp.float32),   # (V, H)
                wi=wi_pad, wh=wh_pad, bi=bi_fold, bhn=bhn_pad, H=H, GP=GP)


def init_params(key, input_size, hidden_size):
    """Deterministic synthetic parameters mirroring nn.Embedding + nn.GRU shapes."""
    ks = jax.random.split(key, 5)
    H = hidden_size
    bound = 1.0 / jnp.sqrt(jnp.float32(H))
    embedding = jax.random.normal(ks[0], (input_size, H), jnp.float32)
    weight_ih = jax.random.uniform(ks[1], (3 * H, H), jnp.float32, -bound, bound)
    weight_hh = jax.random.uniform(ks[2], (3 * H, H), jnp.float32, -bound, bound)
    bias_ih = jax.random.uniform(ks[3], (3 * H,), jnp.float32, -bound, bound)
    bias_hh = jax.random.uniform(ks[4], (3 * H,), jnp.float32, -bound, bound)
    return dict(embedding=embedding, weight_ih=weight_ih, weight_hh=weight_hh,
                bias_ih=bias_ih, bias_hh=bias_hh)


def word2pron_kr_encoder_forward(token, hidden, prepped):
    """Exact equivalent of Word2PronKREncoder.forward(input, hidden): one token.

    token: scalar int32; hidden: (1, 1, H). Returns (output (1,1,H), hidden (1,1,H)).
    NOTE: launching one pallas_call per token is overhead-dominated; drive the
    fused sequence API (encode_sequence_pallas) for real workloads.
    """
    H = prepped["H"]
    tokens = jnp.reshape(token, (1,)).astype(jnp.int32)
    out_seq, h_fin = encode_sequence_pallas(tokens, hidden.reshape(1, H), prepped)
    return out_seq, h_fin.reshape(1, 1, H)


# -----------------------------------------------------------------------------
# Pure-JAX references for correctness checks.
# -----------------------------------------------------------------------------
def gru_step_reference(x, h, params, H):
    Wih, Whh = params["weight_ih"], params["weight_hh"]
    bih, bhh = params["bias_ih"], params["bias_hh"]
    gi = x @ Wih.T + bih
    gh = h @ Whh.T + bhh
    r = jax.nn.sigmoid(gi[:, :H] + gh[:, :H])
    z = jax.nn.sigmoid(gi[:, H:2 * H] + gh[:, H:2 * H])
    n = jnp.tanh(gi[:, 2 * H:] + r * gh[:, 2 * H:])
    return (1.0 - z) * n + z * h


def gru_seq_reference(tokens, h0, params, H):
    h = h0
    outs = []
    for t in list(tokens):
        x = params["embedding"][t].reshape(1, H)
        h = gru_step_reference(x, h, params, H)
        outs.append(h)
    return jnp.stack(outs, axis=0), h          # (T, 1, H), (1, H)


if __name__ == "__main__":
    input_size, hidden_size, seq_len = 16, 32, 8
    key = jax.random.PRNGKey(0)
    params = init_params(key, input_size, hidden_size)
    prepped = prepare_params(params)

    tokens = jax.random.randint(jax.random.PRNGKey(1), (seq_len,), 0, input_size,
                                dtype=jnp.int32)
    h0 = jnp.zeros((1, hidden_size), jnp.float32)            # initHidden()

    # Fused whole-sequence encoder (one pallas_call, one grid step, in-kernel loop).
    out_seq, h_fin = encode_sequence_pallas(tokens, h0, prepped)
    jax.block_until_ready((out_seq, h_fin))

    ref_seq, ref_h = gru_seq_reference(tokens, h0, params, hidden_size)
    assert jnp.allclose(out_seq, ref_seq, atol=1e-5), "sequence output mismatch"
    assert jnp.allclose(h_fin, ref_h, atol=1e-5), "final hidden mismatch"

    # Original module semantics: single-token forward(input, hidden).
    token = jnp.array(3, dtype=jnp.int32)
    hidden0 = jnp.zeros((1, 1, hidden_size), jnp.float32)
    output1, hidden1 = word2pron_kr_encoder_forward(token, hidden0, prepped)
    jax.block_until_ready((output1, hidden1))

    x1 = params["embedding"][token].reshape(1, hidden_size)
    ref1 = gru_step_reference(x1, hidden0.reshape(1, hidden_size), params, hidden_size)
    assert jnp.allclose(output1.reshape(1, hidden_size), ref1, atol=1e-5), "step output mismatch"
    assert jnp.allclose(hidden1.reshape(1, hidden_size), ref1, atol=1e-5), "step hidden mismatch"

    print("KERNEL_OK")
</pallas_src>

<mosaic_0001>
module attributes {stable_mosaic.version = 11 : i64} {
  func.func @gru_seq_kernel(%arg0: i32, %arg1: memref<8x1xi32, #tpu.memory_space<vmem>>, %arg2: memref<16x32xf32, #tpu.memory_space<vmem>>, %arg3: memref<1x128xf32, #tpu.memory_space<vmem>>, %arg4: memref<32x384xf32, #tpu.memory_space<vmem>>, %arg5: memref<128x384xf32, #tpu.memory_space<vmem>>, %arg6: memref<1x384xf32, #tpu.memory_space<vmem>>, %arg7: memref<1x128xf32, #tpu.memory_space<vmem>>, %arg8: memref<8x128xf32, #tpu.memory_space<vmem>>, %arg9: memref<8x384xf32, #tpu.memory_space<vmem>>) attributes {dimension_semantics = [#tpu.dimension_semantics<arbitrary>], iteration_bounds = array<i64: 1>, scalar_prefetch = 0 : i64, scratch_operands = 1 : i64, tpu.core_type = #tpu.core_type<tc>, window_params = [{pipeline_mode = #tpu.pipeline_mode<synchronous>, transform_indices = @transform_0, window_bounds = array<i64: 8, 1>}, {pipeline_mode = #tpu.pipeline_mode<synchronous>, transform_indices = @transform_1, window_bounds = array<i64: 16, 32>}, {pipeline_mode = #tpu.pipeline_mode<synchronous>, transform_indices = @transform_2, window_bounds = array<i64: 1, 128>}, {pipeline_mode = #tpu.pipeline_mode<synchronous>, transform_indices = @transform_3, window_bounds = array<i64: 32, 384>}, {pipeline_mode = #tpu.pipeline_mode<synchronous>, transform_indices = @transform_4, window_bounds = array<i64: 128, 384>}, {pipeline_mode = #tpu.pipeline_mode<synchronous>, transform_indices = @transform_5, window_bounds = array<i64: 1, 384>}, {pipeline_mode = #tpu.pipeline_mode<synchronous>, transform_indices = @transform_6, window_bounds = array<i64: 1, 128>}, {pipeline_mode = #tpu.pipeline_mode<synchronous>, transform_indices = @transform_7, window_bounds = array<i64: 8, 128>}]} {
    %0 = tpu.iota {dimensions = array<i32: 1>} : vector<8x16xi32>
    %c0 = arith.constant 0 : index
    %c0_0 = arith.constant 0 : index
    %1 = vector.load %arg1[%c0, %c0_0] : memref<8x1xi32, #tpu.memory_space<vmem>>, vector<8x1xi32>
    %2 = vector.broadcast %1 : vector<8x1xi32> to vector<8x16xi32>
    %3 = arith.cmpi eq, %0, %2 : vector<8x16xi32>
    %4 = arith.extui %3 : vector<8x16xi1> to vector<8x16xi32>
    %5 = arith.sitofp %4 : vector<8x16xi32> to vector<8x16xf32>
    %c0_1 = arith.constant 0 : index
    %c0_2 = arith.constant 0 : index
    %6 = vector.load %arg2[%c0_1, %c0_2] : memref<16x32xf32, #tpu.memory_space<vmem>>, vector<16x32xf32>
    %cst = arith.constant dense<0.000000e+00> : vector<8x32xf32>
    %7 = tpu.matmul %5, %6, %cst {dimension_numbers = #tpu.dot_dimension_numbers<[1], [0], [0], [1], [0, 0, 1, 1], [], []>} : vector<8x16xf32>, vector<16x32xf32>, vector<8x32xf32> -> vector<8x32xf32>
    %c0_3 = arith.constant 0 : index
    %c0_4 = arith.constant 0 : index
    %8 = vector.load %arg4[%c0_3, %c0_4] : memref<32x384xf32, #tpu.memory_space<vmem>>, vector<32x384xf32>
    %cst_5 = arith.constant dense<0.000000e+00> : vector<8x384xf32>
    %9 = tpu.matmul %7, %8, %cst_5 {dimension_numbers = #tpu.dot_dimension_numbers<[1], [0], [0], [1], [0, 0, 1, 1], [], []>} : vector<8x32xf32>, vector<32x384xf32>, vector<8x384xf32> -> vector<8x384xf32>
    %c0_6 = arith.constant 0 : index
    %c0_7 = arith.constant 0 : index
    %10 = vector.load %arg6[%c0_6, %c0_7] : memref<1x384xf32, #tpu.memory_space<vmem>>, vector<1x384xf32>
    %11 = vector.broadcast %10 : vector<1x384xf32> to vector<8x384xf32>
    %12 = arith.addf %9, %11 : vector<8x384xf32>
    %c0_8 = arith.constant 0 : index
    %c0_9 = arith.constant 0 : index
    %13 = vector.load %arg9[%c0_8, %c0_9] : memref<8x384xf32, #tpu.memory_space<vmem>>, vector<8x384xf32>
    tpu.vector_store %arg9[%c0_8, %c0_9], %12 {strides = array<i32>} : memref<8x384xf32, #tpu.memory_space<vmem>>, vector<8x384xf32>,
    %c0_10 = arith.constant 0 : index
    %c0_11 = arith.constant 0 : index
    %14 = vector.load %arg7[%c0_10, %c0_11] : memref<1x128xf32, #tpu.memory_space<vmem>>, vector<1x128xf32>
    %c0_12 = arith.constant 0 : index
    %c0_13 = arith.constant 0 : index
    %15 = vector.load %arg3[%c0_12, %c0_13] : memref<1x128xf32, #tpu.memory_space<vmem>>, vector<1x128xf32>
    %c0_i32 = arith.constant 0 : i32
    %16 = arith.index_cast %c0_i32 : i32 to index
    %c0_14 = arith.constant 0 : index
    %17 = vector.load %arg9[%16, %c0_14] : memref<8x384xf32, #tpu.memory_space<vmem>>, vector<1x384xf32>
    %c0_15 = arith.constant 0 : index
    %c0_16 = arith.constant 0 : index
    %18 = vector.load %arg5[%c0_15, %c0_16] : memref<128x384xf32, #tpu.memory_space<vmem>>, vector<128x384xf32>
    %cst_17 = arith.constant dense<0.000000e+00> : vector<1x384xf32>
    %19 = tpu.matmul %15, %18, %cst_17 {dimension_numbers = #tpu.dot_dimension_numbers<[1], [0], [0], [1], [0, 0, 1, 1], [], []>} : vector<1x128xf32>, vector<128x384xf32>, vector<1x384xf32> -> vector<1x384xf32>
    %20 = vector.extract_strided_slice %17 {offsets = [0, 0], sizes = [1, 128], strides = [1, 1]} : vector<1x384xf32> to vector<1x128xf32>
    %21 = vector.extract_strided_slice %19 {offsets = [0, 0], sizes = [1, 128], strides = [1, 1]} : vector<1x384xf32> to vector<1x128xf32>
    %22 = arith.addf %20, %21 : vector<1x128xf32>
    %23 = arith.negf %22 : vector<1x128xf32>
    %24 = math.exp %23 : vector<1x128xf32>
    %cst_18 = arith.constant 1.000000e+00 : f32
    %25 = vector.broadcast %cst_18 : f32 to vector<1x128xf32>
    %26 = arith.addf %25, %24 : vector<1x128xf32>
    %27 = arith.divf %25, %26 : vector<1x128xf32>
    %28 = vector.extract_strided_slice %17 {offsets = [0, 128], sizes = [1, 128], strides = [1, 1]} : vector<1x384xf32> to vector<1x128xf32>
    %29 = vector.extract_strided_slice %19 {offsets = [0, 128], sizes = [1, 128], strides = [1, 1]} : vector<1x384xf32> to vector<1x128xf32>
    %30 = arith.addf %28, %29 : vector<1x128xf32>
    %31 = arith.negf %30 : vector<1x128xf32>
    %32 = math.exp %31 : vector<1x128xf32>
    %cst_19 = arith.constant 1.000000e+00 : f32
    %33 = vector.broadcast %cst_19 : f32 to vector<1x128xf32>
    %34 = arith.addf %33, %32 : vector<1x128xf32>
    %35 = arith.divf %33, %34 : vector<1x128xf32>
    %36 = vector.extract_strided_slice %17 {offsets = [0, 256], sizes = [1, 128], strides = [1, 1]} : vector<1x384xf32> to vector<1x128xf32>
    %37 = vector.extract_strided_slice %19 {offsets = [0, 256], sizes = [1, 128], strides = [1, 1]} : vector<1x384xf32> to vector<1x128xf32>
    %38 = arith.addf %37, %14 : vector<1x128xf32>
    %39 = arith.mulf %27, %38 : vector<1x128xf32>
    %40 = arith.addf %36, %39 : vector<1x128xf32>
    %41 = math.tanh %40 : vector<1x128xf32>
    %cst_20 = arith.constant 1.000000e+00 : f32
    %42 = vector.broadcast %cst_20 : f32 to vector<1x128xf32>
    %43 = arith.subf %42, %35 : vector<1x128xf32>
    %44 = arith.mulf %43, %41 : vector<1x128xf32>
    %45 = arith.mulf %35, %15 : vector<1x128xf32>
    %46 = arith.addf %44, %45 : vector<1x128xf32>
    %47 = arith.index_cast %c0_i32 : i32 to index
    %c0_21 = arith.constant 0 : index
    %48 = vector.load %arg8[%47, %c0_21] : memref<8x128xf32, #tpu.memory_space<vmem>>, vector<1x128xf32>
    tpu.vector_store %arg8[%47, %c0_21], %46 {strides = array<i32>} : memref<8x128xf32, #tpu.memory_space<vmem>>, vector<1x128xf32>,
    %c1_i32 = arith.constant 1 : i32
    %49 = arith.index_cast %c1_i32 : i32 to index
    %c0_22 = arith.constant 0 : index
    %50 = vector.load %arg9[%49, %c0_22] : memref<8x384xf32, #tpu.memory_space<vmem>>, vector<1x384xf32>
    %c0_23 = arith.constant 0 : index
    %c0_24 = arith.constant 0 : index
    %51 = vector.load %arg5[%c0_23, %c0_24] : memref<128x384xf32, #tpu.memory_space<vmem>>, vector<128x384xf32>
    %cst_25 = arith.constant dense<0.000000e+00> : vector<1x384xf32>
    %52 = tpu.matmul %46, %51, %cst_25 {dimension_numbers = #tpu.dot_dimension_numbers<[1], [0], [0], [1], [0, 0, 1, 1], [], []>} : vector<1x128xf32>, vector<128x384xf32>, vector<1x384xf32> -> vector<1x384xf32>
    %53 = vector.extract_strided_slice %50 {offsets = [0, 0], sizes = [1, 128], strides = [1, 1]} : vector<1x384xf32> to vector<1x128xf32>
    %54 = vector.extract_strided_slice %52 {offsets = [0, 0], sizes = [1, 128], strides = [1, 1]} : vector<1x384xf32> to vector<1x128xf32>
    %55 = arith.addf %53, %54 : vector<1x128xf32>
    %56 = arith.negf %55 : vector<1x128xf32>
    %57 = math.exp %56 : vector<1x128xf32>
    %cst_26 = arith.constant 1.000000e+00 : f32
    %58 = vector.broadcast %cst_26 : f32 to vector<1x128xf32>
    %59 = arith.addf %58, %57 : vector<1x128xf32>
    %60 = arith.divf %58, %59 : vector<1x128xf32>
    %61 = vector.extract_strided_slice %50 {offsets = [0, 128], sizes = [1, 128], strides = [1, 1]} : vector<1x384xf32> to vector<1x128xf32>
    %62 = vector.extract_strided_slice %52 {offsets = [0, 128], sizes = [1, 128], strides = [1, 1]} : vector<1x384xf32> to vector<1x128xf32>
    %63 = arith.addf %61, %62 : vector<1x128xf32>
    %64 = arith.negf %63 : vector<1x128xf32>
    %65 = math.exp %64 : vector<1x128xf32>
    %cst_27 = arith.constant 1.000000e+00 : f32
    %66 = vector.broadcast %cst_27 : f32 to vector<1x128xf32>
    %67 = arith.addf %66, %65 : vector<1x128xf32>
    %68 = arith.divf %66, %67 : vector<1x128xf32>
    %69 = vector.extract_strided_slice %50 {offsets = [0, 256], sizes = [1, 128], strides = [1, 1]} : vector<1x384xf32> to vector<1x128xf32>
    %70 = vector.extract_strided_slice %52 {offsets = [0, 256], sizes = [1, 128], strides = [1, 1]} : vector<1x384xf32> to vector<1x128xf32>
    %71 = arith.addf %70, %14 : vector<1x128xf32>
    %72 = arith.mulf %60, %71 : vector<1x128xf32>
    %73 = arith.addf %69, %72 : vector<1x128xf32>
    %74 = math.tanh %73 : vector<1x128xf32>
    %cst_28 = arith.constant 1.000000e+00 : f32
    %75 = vector.broadcast %cst_28 : f32 to vector<1x128xf32>
    %76 = arith.subf %75, %68 : vector<1x128xf32>
    %77 = arith.mulf %76, %74 : vector<1x128xf32>
    %78 = arith.mulf %68, %46 : vector<1x128xf32>
    %79 = arith.addf %77, %78 : vector<1x128xf32>
    %80 = arith.index_cast %c1_i32 : i32 to index
    %c0_29 = arith.constant 0 : index
    %81 = vector.load %arg8[%80, %c0_29] : memref<8x128xf32, #tpu.memory_space<vmem>>, vector<1x128xf32>
    tpu.vector_store %arg8[%80, %c0_29], %79 {strides = array<i32>} : memref<8x128xf32, #tpu.memory_space<vmem>>, vector<1x128xf32>,
    %c2_i32 = arith.constant 2 : i32
    %82 = arith.index_cast %c2_i32 : i32 to index
    %c0_30 = arith.constant 0 : index
    %83 = vector.load %arg9[%82, %c0_30] : memref<8x384xf32, #tpu.memory_space<vmem>>, vector<1x384xf32>
    %c0_31 = arith.constant 0 : index
    %c0_32 = arith.constant 0 : index
    %84 = vector.load %arg5[%c0_31, %c0_32] : memref<128x384xf32, #tpu.memory_space<vmem>>, vector<128x384xf32>
    %cst_33 = arith.constant dense<0.000000e+00> : vector<1x384xf32>
    %85 = tpu.matmul %79, %84, %cst_33 {dimension_numbers = #tpu.dot_dimension_numbers<[1], [0], [0], [1], [0, 0, 1, 1], [], []>} : vector<1x128xf32>, vector<128x384xf32>, vector<1x384xf32> -> vector<1x384xf32>
    %86 = vector.extract_strided_slice %83 {offsets = [0, 0], sizes = [1, 128], strides = [1, 1]} : vector<1x384xf32> to vector<1x128xf32>
    %87 = vector.extract_strided_slice %85 {offsets = [0, 0], sizes = [1, 128], strides = [1, 1]} : vector<1x384xf32> to vector<1x128xf32>
    %88 = arith.addf %86, %87 : vector<1x128xf32>
    %89 = arith.negf %88 : vector<1x128xf32>
    %90 = math.exp %89 : vector<1x128xf32>
    %cst_34 = arith.constant 1.000000e+00 : f32
    %91 = vector.broadcast %cst_34 : f32 to vector<1x128xf32>
    %92 = arith.addf %91, %90 : vector<1x128xf32>
    %93 = arith.divf %91, %92 : vector<1x128xf32>
    %94 = vector.extract_strided_slice %83 {offsets = [0, 128], sizes = [1, 128], strides = [1, 1]} : vector<1x384xf32> to vector<1x128xf32>
    %95 = vector.extract_strided_slice %85 {offsets = [0, 128], sizes = [1, 128], strides = [1, 1]} : vector<1x384xf32> to vector<1x128xf32>
    %96 = arith.addf %94, %95 : vector<1x128xf32>
    %97 = arith.negf %96 : vector<1x128xf32>
    %98 = math.exp %97 : vector<1x128xf32>
    %cst_35 = arith.constant 1.000000e+00 : f32
    %99 = vector.broadcast %cst_35 : f32 to vector<1x128xf32>
    %100 = arith.addf %99, %98 : vector<1x128xf32>
    %101 = arith.divf %99, %100 : vector<1x128xf32>
    %102 = vector.extract_strided_slice %83 {offsets = [0, 256], sizes = [1, 128], strides = [1, 1]} : vector<1x384xf32> to vector<1x128xf32>
    %103 = vector.extract_strided_slice %85 {offsets = [0, 256], sizes = [1, 128], strides = [1, 1]} : vector<1x384xf32> to vector<1x128xf32>
    %104 = arith.addf %103, %14 : vector<1x128xf32>
    %105 = arith.mulf %93, %104 : vector<1x128xf32>
    %106 = arith.addf %102, %105 : vector<1x128xf32>
    %107 = math.tanh %106 : vector<1x128xf32>
    %cst_36 = arith.constant 1.000000e+00 : f32
    %108 = vector.broadcast %cst_36 : f32 to vector<1x128xf32>
    %109 = arith.subf %108, %101 : vector<1x128xf32>
    %110 = arith.mulf %109, %107 : vector<1x128xf32>
    %111 = arith.mulf %101, %79 : vector<1x128xf32>
    %112 = arith.addf %110, %111 : vector<1x128xf32>
    %113 = arith.index_cast %c2_i32 : i32 to index
    %c0_37 = arith.constant 0 : index
    %114 = vector.load %arg8[%113, %c0_37] : memref<8x128xf32, #tpu.memory_space<vmem>>, vector<1x128xf32>
    tpu.vector_store %arg8[%113, %c0_37], %112 {strides = array<i32>} : memref<8x128xf32, #tpu.memory_space<vmem>>, vector<1x128xf32>,
    %c3_i32 = arith.constant 3 : i32
    %115 = arith.index_cast %c3_i32 : i32 to index
    %c0_38 = arith.constant 0 : index
    %116 = vector.load %arg9[%115, %c0_38] : memref<8x384xf32, #tpu.memory_space<vmem>>, vector<1x384xf32>
    %c0_39 = arith.constant 0 : index
    %c0_40 = arith.constant 0 : index
    %117 = vector.load %arg5[%c0_39, %c0_40] : memref<128x384xf32, #tpu.memory_space<vmem>>, vector<128x384xf32>
    %cst_41 = arith.constant dense<0.000000e+00> : vector<1x384xf32>
    %118 = tpu.matmul %112, %117, %cst_41 {dimension_numbers = #tpu.dot_dimension_numbers<[1], [0], [0], [1], [0, 0, 1, 1], [], []>} : vector<1x128xf32>, vector<128x384xf32>, vector<1x384xf32> -> vector<1x384xf32>
    %119 = vector.extract_strided_slice %116 {offsets = [0, 0], sizes = [1, 128], strides = [1, 1]} : vector<1x384xf32> to vector<1x128xf32>
    %120 = vector.extract_strided_slice %118 {offsets = [0, 0], sizes = [1, 128], strides = [1, 1]} : vector<1x384xf32> to vector<1x128xf32>
    %121 = arith.addf %119, %120 : vector<1x128xf32>
    %122 = arith.negf %121 : vector<1x128xf32>
    %123 = math.exp %122 : vector<1x128xf32>
    %cst_42 = arith.constant 1.000000e+00 : f32
    %124 = vector.broadcast %cst_42 : f32 to vector<1x128xf32>
    %125 = arith.addf %124, %123 : vector<1x128xf32>
    %126 = arith.divf %124, %125 : vector<1x128xf32>
    %127 = vector.extract_strided_slice %116 {offsets = [0, 128], sizes = [1, 128], strides = [1, 1]} : vector<1x384xf32> to vector<1x128xf32>
    %128 = vector.extract_strided_slice %118 {offsets = [0, 128], sizes = [1, 128], strides = [1, 1]} : vector<1x384xf32> to vector<1x128xf32>
    %129 = arith.addf %127, %128 : vector<1x128xf32>
    %130 = arith.negf %129 : vector<1x128xf32>
    %131 = math.exp %130 : vector<1x128xf32>
    %cst_43 = arith.constant 1.000000e+00 : f32
    %132 = vector.broadcast %cst_43 : f32 to vector<1x128xf32>
    %133 = arith.addf %132, %131 : vector<1x128xf32>
    %134 = arith.divf %132, %133 : vector<1x128xf32>
    %135 = vector.extract_strided_slice %116 {offsets = [0, 256], sizes = [1, 128], strides = [1, 1]} : vector<1x384xf32> to vector<1x128xf32>
    %136 = vector.extract_strided_slice %118 {offsets = [0, 256], sizes = [1, 128], strides = [1, 1]} : vector<1x384xf32> to vector<1x128xf32>
    %137 = arith.addf %136, %14 : vector<1x128xf32>
    %138 = arith.mulf %126, %137 : vector<1x128xf32>
    %139 = arith.addf %135, %138 : vector<1x128xf32>
    %140 = math.tanh %139 : vector<1x128xf32>
    %cst_44 = arith.constant 1.000000e+00 : f32
    %141 = vector.broadcast %cst_44 : f32 to vector<1x128xf32>
    %142 = arith.subf %141, %134 : vector<1x128xf32>
    %143 = arith.mulf %142, %140 : vector<1x128xf32>
    %144 = arith.mulf %134, %112 : vector<1x128xf32>
    %145 = arith.addf %143, %144 : vector<1x128xf32>
    %146 = arith.index_cast %c3_i32 : i32 to index
    %c0_45 = arith.constant 0 : index
    %147 = vector.load %arg8[%146, %c0_45] : memref<8x128xf32, #tpu.memory_space<vmem>>, vector<1x128xf32>
    tpu.vector_store %arg8[%146, %c0_45], %145 {strides = array<i32>} : memref<8x128xf32, #tpu.memory_space<vmem>>, vector<1x128xf32>,
    %c4_i32 = arith.constant 4 : i32
    %148 = arith.index_cast %c4_i32 : i32 to index
    %c0_46 = arith.constant 0 : index
    %149 = vector.load %arg9[%148, %c0_46] : memref<8x384xf32, #tpu.memory_space<vmem>>, vector<1x384xf32>
    %c0_47 = arith.constant 0 : index
    %c0_48 = arith.constant 0 : index
    %150 = vector.load %arg5[%c0_47, %c0_48] : memref<128x384xf32, #tpu.memory_space<vmem>>, vector<128x384xf32>
    %cst_49 = arith.constant dense<0.000000e+00> : vector<1x384xf32>
    %151 = tpu.matmul %145, %150, %cst_49 {dimension_numbers = #tpu.dot_dimension_numbers<[1], [0], [0], [1], [0, 0, 1, 1], [], []>} : vector<1x128xf32>, vector<128x384xf32>, vector<1x384xf32> -> vector<1x384xf32>
    %152 = vector.extract_strided_slice %149 {offsets = [0, 0], sizes = [1, 128], strides = [1, 1]} : vector<1x384xf32> to vector<1x128xf32>
    %153 = vector.extract_strided_slice %151 {offsets = [0, 0], sizes = [1, 128], strides = [1, 1]} : vector<1x384xf32> to vector<1x128xf32>
    %154 = arith.addf %152, %153 : vector<1x128xf32>
    %155 = arith.negf %154 : vector<1x128xf32>
    %156 = math.exp %155 : vector<1x128xf32>
    %cst_50 = arith.constant 1.000000e+00 : f32
    %157 = vector.broadcast %cst_50 : f32 to vector<1x128xf32>
    %158 = arith.addf %157, %156 : vector<1x128xf32>
    %159 = arith.divf %157, %158 : vector<1x128xf32>
    %160 = vector.extract_strided_slice %149 {offsets = [0, 128], sizes = [1, 128], strides = [1, 1]} : vector<1x384xf32> to vector<1x128xf32>
    %161 = vector.extract_strided_slice %151 {offsets = [0, 128], sizes = [1, 128], strides = [1, 1]} : vector<1x384xf32> to vector<1x128xf32>
    %162 = arith.addf %160, %161 : vector<1x128xf32>
    %163 = arith.negf %162 : vector<1x128xf32>
    %164 = math.exp %163 : vector<1x128xf32>
    %cst_51 = arith.constant 1.000000e+00 : f32
    %165 = vector.broadcast %cst_51 : f32 to vector<1x128xf32>
    %166 = arith.addf %165, %164 : vector<1x128xf32>
    %167 = arith.divf %165, %166 : vector<1x128xf32>
    %168 = vector.extract_strided_slice %149 {offsets = [0, 256], sizes = [1, 128], strides = [1, 1]} : vector<1x384xf32> to vector<1x128xf32>
    %169 = vector.extract_strided_slice %151 {offsets = [0, 256], sizes = [1, 128], strides = [1, 1]} : vector<1x384xf32> to vector<1x128xf32>
    %170 = arith.addf %169, %14 : vector<1x128xf32>
    %171 = arith.mulf %159, %170 : vector<1x128xf32>
    %172 = arith.addf %168, %171 : vector<1x128xf32>
    %173 = math.tanh %172 : vector<1x128xf32>
    %cst_52 = arith.constant 1.000000e+00 : f32
    %174 = vector.broadcast %cst_52 : f32 to vector<1x128xf32>
    %175 = arith.subf %174, %167 : vector<1x128xf32>
    %176 = arith.mulf %175, %173 : vector<1x128xf32>
    %177 = arith.mulf %167, %145 : vector<1x128xf32>
    %178 = arith.addf %176, %177 : vector<1x128xf32>
    %179 = arith.index_cast %c4_i32 : i32 to index
    %c0_53 = arith.constant 0 : index
    %180 = vector.load %arg8[%179, %c0_53] : memref<8x128xf32, #tpu.memory_space<vmem>>, vector<1x128xf32>
    tpu.vector_store %arg8[%179, %c0_53], %178 {strides = array<i32>} : memref<8x128xf32, #tpu.memory_space<vmem>>, vector<1x128xf32>,
    %c5_i32 = arith.constant 5 : i32
    %181 = arith.index_cast %c5_i32 : i32 to index
    %c0_54 = arith.constant 0 : index
    %182 = vector.load %arg9[%181, %c0_54] : memref<8x384xf32, #tpu.memory_space<vmem>>, vector<1x384xf32>
    %c0_55 = arith.constant 0 : index
    %c0_56 = arith.constant 0 : index
    %183 = vector.load %arg5[%c0_55, %c0_56] : memref<128x384xf32, #tpu.memory_space<vmem>>, vector<128x384xf32>
    %cst_57 = arith.constant dense<0.000000e+00> : vector<1x384xf32>
    %184 = tpu.matmul %178, %183, %cst_57 {dimension_numbers = #tpu.dot_dimension_numbers<[1], [0], [0], [1], [0, 0, 1, 1], [], []>} : vector<1x128xf32>, vector<128x384xf32>, vector<1x384xf32> -> vector<1x384xf32>
    %185 = vector.extract_strided_slice %182 {offsets = [0, 0], sizes = [1, 128], strides = [1, 1]} : vector<1x384xf32> to vector<1x128xf32>
    %186 = vector.extract_strided_slice %184 {offsets = [0, 0], sizes = [1, 128], strides = [1, 1]} : vector<1x384xf32> to vector<1x128xf32>
    %187 = arith.addf %185, %186 : vector<1x128xf32>
    %188 = arith.negf %187 : vector<1x128xf32>
    %189 = math.exp %188 : vector<1x128xf32>
    %cst_58 = arith.constant 1.000000e+00 : f32
    %190 = vector.broadcast %cst_58 : f32 to vector<1x128xf32>
    %191 = arith.addf %190, %189 : vector<1x128xf32>
    %192 = arith.divf %190, %191 : vector<1x128xf32>
    %193 = vector.extract_strided_slice %182 {offsets = [0, 128], sizes = [1, 128], strides = [1, 1]} : vector<1x384xf32> to vector<1x128xf32>
    %194 = vector.extract_strided_slice %184 {offsets = [0, 128], sizes = [1, 128], strides = [1, 1]} : vector<1x384xf32> to vector<1x128xf32>
    %195 = arith.addf %193, %194 : vector<1x128xf32>
    %196 = arith.negf %195 : vector<1x128xf32>
    %197 = math.exp %196 : vector<1x128xf32>
    %cst_59 = arith.constant 1.000000e+00 : f32
    %198 = vector.broadcast %cst_59 : f32 to vector<1x128xf32>
    %199 = arith.addf %198, %197 : vector<1x128xf32>
    %200 = arith.divf %198, %199 : vector<1x128xf32>
    %201 = vector.extract_strided_slice %182 {offsets = [0, 256], sizes = [1, 128], strides = [1, 1]} : vector<1x384xf32> to vector<1x128xf32>
    %202 = vector.extract_strided_slice %184 {offsets = [0, 256], sizes = [1, 128], strides = [1, 1]} : vector<1x384xf32> to vector<1x128xf32>
    %203 = arith.addf %202, %14 : vector<1x128xf32>
    %204 = arith.mulf %192, %203 : vector<1x128xf32>
    %205 = arith.addf %201, %204 : vector<1x128xf32>
    %206 = math.tanh %205 : vector<1x128xf32>
    %cst_60 = arith.constant 1.000000e+00 : f32
    %207 = vector.broadcast %cst_60 : f32 to vector<1x128xf32>
    %208 = arith.subf %207, %200 : vector<1x128xf32>
    %209 = arith.mulf %208, %206 : vector<1x128xf32>
    %210 = arith.mulf %200, %178 : vector<1x128xf32>
    %211 = arith.addf %209, %210 : vector<1x128xf32>
    %212 = arith.index_cast %c5_i32 : i32 to index
    %c0_61 = arith.constant 0 : index
    %213 = vector.load %arg8[%212, %c0_61] : memref<8x128xf32, #tpu.memory_space<vmem>>, vector<1x128xf32>
    tpu.vector_store %arg8[%212, %c0_61], %211 {strides = array<i32>} : memref<8x128xf32, #tpu.memory_space<vmem>>, vector<1x128xf32>,
    %c6_i32 = arith.constant 6 : i32
    %214 = arith.index_cast %c6_i32 : i32 to index
    %c0_62 = arith.constant 0 : index
    %215 = vector.load %arg9[%214, %c0_62] : memref<8x384xf32, #tpu.memory_space<vmem>>, vector<1x384xf32>
    %c0_63 = arith.constant 0 : index
    %c0_64 = arith.constant 0 : index
    %216 = vector.load %arg5[%c0_63, %c0_64] : memref<128x384xf32, #tpu.memory_space<vmem>>, vector<128x384xf32>
    %cst_65 = arith.constant dense<0.000000e+00> : vector<1x384xf32>
    %217 = tpu.matmul %211, %216, %cst_65 {dimension_numbers = #tpu.dot_dimension_numbers<[1], [0], [0], [1], [0, 0, 1, 1], [], []>} : vector<1x128xf32>, vector<128x384xf32>, vector<1x384xf32> -> vector<1x384xf32>
    %218 = vector.extract_strided_slice %215 {offsets = [0, 0], sizes = [1, 128], strides = [1, 1]} : vector<1x384xf32> to vector<1x128xf32>
    %219 = vector.extract_strided_slice %217 {offsets = [0, 0], sizes = [1, 128], strides = [1, 1]} : vector<1x384xf32> to vector<1x128xf32>
    %220 = arith.addf %218, %219 : vector<1x128xf32>
    %221 = arith.negf %220 : vector<1x128xf32>
    %222 = math.exp %221 : vector<1x128xf32>
    %cst_66 = arith.constant 1.000000e+00 : f32
    %223 = vector.broadcast %cst_66 : f32 to vector<1x128xf32>
    %224 = arith.addf %223, %222 : vector<1x128xf32>
    %225 = arith.divf %223, %224 : vector<1x128xf32>
    %226 = vector.extract_strided_slice %215 {offsets = [0, 128], sizes = [1, 128], strides = [1, 1]} : vector<1x384xf32> to vector<1x128xf32>
    %227 = vector.extract_strided_slice %217 {offsets = [0, 128], sizes = [1, 128], strides = [1, 1]} : vector<1x384xf32> to vector<1x128xf32>
    %228 = arith.addf %226, %227 : vector<1x128xf32>
    %229 = arith.negf %228 : vector<1x128xf32>
    %230 = math.exp %229 : vector<1x128xf32>
    %cst_67 = arith.constant 1.000000e+00 : f32
    %231 = vector.broadcast %cst_67 : f32 to vector<1x128xf32>
    %232 = arith.addf %231, %230 : vector<1x128xf32>
    %233 = arith.divf %231, %232 : vector<1x128xf32>
    %234 = vector.extract_strided_slice %215 {offsets = [0, 256], sizes = [1, 128], strides = [1, 1]} : vector<1x384xf32> to vector<1x128xf32>
    %235 = vector.extract_strided_slice %217 {offsets = [0, 256], sizes = [1, 128], strides = [1, 1]} : vector<1x384xf32> to vector<1x128xf32>
    %236 = arith.addf %235, %14 : vector<1x128xf32>
    %237 = arith.mulf %225, %236 : vector<1x128xf32>
    %238 = arith.addf %234, %237 : vector<1x128xf32>
    %239 = math.tanh %238 : vector<1x128xf32>
    %cst_68 = arith.constant 1.000000e+00 : f32
    %240 = vector.broadcast %cst_68 : f32 to vector<1x128xf32>
    %241 = arith.subf %240, %233 : vector<1x128xf32>
    %242 = arith.mulf %241, %239 : vector<1x128xf32>
    %243 = arith.mulf %233, %211 : vector<1x128xf32>
    %244 = arith.addf %242, %243 : vector<1x128xf32>
    %245 = arith.index_cast %c6_i32 : i32 to index
    %c0_69 = arith.constant 0 : index
    %246 = vector.load %arg8[%245, %c0_69] : memref<8x128xf32, #tpu.memory_space<vmem>>, vector<1x128xf32>
    tpu.vector_store %arg8[%245, %c0_69], %244 {strides = array<i32>} : memref<8x128xf32, #tpu.memory_space<vmem>>, vector<1x128xf32>,
    %c7_i32 = arith.constant 7 : i32
    %247 = arith.index_cast %c7_i32 : i32 to index
    %c0_70 = arith.constant 0 : index
    %248 = vector.load %arg9[%247, %c0_70] : memref<8x384xf32, #tpu.memory_space<vmem>>, vector<1x384xf32>
    %c0_71 = arith.constant 0 : index
    %c0_72 = arith.constant 0 : index
    %249 = vector.load %arg5[%c0_71, %c0_72] : memref<128x384xf32, #tpu.memory_space<vmem>>, vector<128x384xf32>
    %cst_73 = arith.constant dense<0.000000e+00> : vector<1x384xf32>
    %250 = tpu.matmul %244, %249, %cst_73 {dimension_numbers = #tpu.dot_dimension_numbers<[1], [0], [0], [1], [0, 0, 1, 1], [], []>} : vector<1x128xf32>, vector<128x384xf32>, vector<1x384xf32> -> vector<1x384xf32>
    %251 = vector.extract_strided_slice %248 {offsets = [0, 0], sizes = [1, 128], strides = [1, 1]} : vector<1x384xf32> to vector<1x128xf32>
    %252 = vector.extract_strided_slice %250 {offsets = [0, 0], sizes = [1, 128], strides = [1, 1]} : vector<1x384xf32> to vector<1x128xf32>
    %253 = arith.addf %251, %252 : vector<1x128xf32>
    %254 = arith.negf %253 : vector<1x128xf32>
    %255 = math.exp %254 : vector<1x128xf32>
    %cst_74 = arith.constant 1.000000e+00 : f32
    %256 = vector.broadcast %cst_74 : f32 to vector<1x128xf32>
    %257 = arith.addf %256, %255 : vector<1x128xf32>
    %258 = arith.divf %256, %257 : vector<1x128xf32>
    %259 = vector.extract_strided_slice %248 {offsets = [0, 128], sizes = [1, 128], strides = [1, 1]} : vector<1x384xf32> to vector<1x128xf32>
    %260 = vector.extract_strided_slice %250 {offsets = [0, 128], sizes = [1, 128], strides = [1, 1]} : vector<1x384xf32> to vector<1x128xf32>
    %261 = arith.addf %259, %260 : vector<1x128xf32>
    %262 = arith.negf %261 : vector<1x128xf32>
    %263 = math.exp %262 : vector<1x128xf32>
    %cst_75 = arith.constant 1.000000e+00 : f32
    %264 = vector.broadcast %cst_75 : f32 to vector<1x128xf32>
    %265 = arith.addf %264, %263 : vector<1x128xf32>
    %266 = arith.divf %264, %265 : vector<1x128xf32>
    %267 = vector.extract_strided_slice %248 {offsets = [0, 256], sizes = [1, 128], strides = [1, 1]} : vector<1x384xf32> to vector<1x128xf32>
    %268 = vector.extract_strided_slice %250 {offsets = [0, 256], sizes = [1, 128], strides = [1, 1]} : vector<1x384xf32> to vector<1x128xf32>
    %269 = arith.addf %268, %14 : vector<1x128xf32>
    %270 = arith.mulf %258, %269 : vector<1x128xf32>
    %271 = arith.addf %267, %270 : vector<1x128xf32>
    %272 = math.tanh %271 : vector<1x128xf32>
    %cst_76 = arith.constant 1.000000e+00 : f32
    %273 = vector.broadcast %cst_76 : f32 to vector<1x128xf32>
    %274 = arith.subf %273, %266 : vector<1x128xf32>
    %275 = arith.mulf %274, %272 : vector<1x128xf32>
    %276 = arith.mulf %266, %244 : vector<1x128xf32>
    %277 = arith.addf %275, %276 : vector<1x128xf32>
    %278 = arith.index_cast %c7_i32 : i32 to index
    %c0_77 = arith.constant 0 : index
    %279 = vector.load %arg8[%278, %c0_77] : memref<8x128xf32, #tpu.memory_space<vmem>>, vector<1x128xf32>
    tpu.vector_store %arg8[%278, %c0_77], %277 {strides = array<i32>} : memref<8x128xf32, #tpu.memory_space<vmem>>, vector<1x128xf32>,
    %c8_i32 = arith.constant 8 : i32
    return
  }
  func.func @transform_0(%arg0: i32) -> (i32, i32) {
    %c0_i32 = arith.constant 0 : i32
    %c0_i32_0 = arith.constant 0 : i32
    %c0_i32_1 = arith.constant 0 : i32
    return %c0_i32, %c0_i32_0 : i32, i32
  }
  func.func @transform_1(%arg0: i32) -> (i32, i32) {
    %c0_i32 = arith.constant 0 : i32
    %c0_i32_0 = arith.constant 0 : i32
    %c0_i32_1 = arith.constant 0 : i32
    return %c0_i32, %c0_i32_0 : i32, i32
  }
  func.func @transform_2(%arg0: i32) -> (i32, i32) {
    %c0_i32 = arith.constant 0 : i32
    %c0_i32_0 = arith.constant 0 : i32
    %c0_i32_1 = arith.constant 0 : i32
    return %c0_i32, %c0_i32_0 : i32, i32
  }
  func.func @transform_3(%arg0: i32) -> (i32, i32) {
    %c0_i32 = arith.constant 0 : i32
    %c0_i32_0 = arith.constant 0 : i32
    %c0_i32_1 = arith.constant 0 : i32
    return %c0_i32, %c0_i32_0 : i32, i32
  }
  func.func @transform_4(%arg0: i32) -> (i32, i32) {
    %c0_i32 = arith.constant 0 : i32
    %c0_i32_0 = arith.constant 0 : i32
    %c0_i32_1 = arith.constant 0 : i32
    return %c0_i32, %c0_i32_0 : i32, i32
  }
  func.func @transform_5(%arg0: i32) -> (i32, i32) {
    %c0_i32 = arith.constant 0 : i32
    %c0_i32_0 = arith.constant 0 : i32
    %c0_i32_1 = arith.constant 0 : i32
    return %c0_i32, %c0_i32_0 : i32, i32
  }
  func.func @transform_6(%arg0: i32) -> (i32, i32) {
    %c0_i32 = arith.constant 0 : i32
    %c0_i32_0 = arith.constant 0 : i32
    %c0_i32_1 = arith.constant 0 : i32
    return %c0_i32, %c0_i32_0 : i32, i32
  }
  func.func @transform_7(%arg0: i32) -> (i32, i32) {
    %c0_i32 = arith.constant 0 : i32
    %c0_i32_0 = arith.constant 0 : i32
    %c0_i32_1 = arith.constant 0 : i32
    return %c0_i32, %c0_i32_0 : i32, i32
  }
}

</mosaic_0001>

<llo_original>
// kernel: tpu_custom_call.1
$region0: #{tpu_custom_call.1}
  #allocation0 [shape = 'u32[]', space=smem, size = 0x4, offset = 0x4, fixed_abs, tag = 'smem constant byte address 0x4 - core index']
  #allocation1 [shape = 'u32[144,128]{1,0:T(1,128)}', space=vmem, size = 0x12000, scoped, tag = 'internal scratch']
  #allocation2 [shape = 'f32[8,384]{1,0:T(8,128)}', space=vmem, size = 0x3000, scoped, tag = 'scratch operand']
  %s0 = inlined_call_operand.vmem [shape: s32[8,1], index: 0, kind: input, shape index: {}]
  %s1 = inlined_call_operand.hbm [shape: f32[16,32], index: 1, kind: input, shape index: {}]
  %s2 = inlined_call_operand.vmem [shape: f32[1,128], index: 2, kind: input, shape index: {}]
  %s3 = inlined_call_operand.hbm [shape: f32[32,384], index: 3, kind: input, shape index: {}]
  %s4 = inlined_call_operand.hbm [shape: f32[128,384], index: 4, kind: input, shape index: {}]
  %s5 = inlined_call_operand.vmem [shape: f32[1,384], index: 5, kind: input, shape index: {}]
  %s6 = inlined_call_operand.vmem [shape: f32[1,128], index: 6, kind: input, shape index: {}]
  %s7 = inlined_call_operand.hbm [shape: f32[8,128], index: 7, kind: output, shape index: {}]
  %s8 = sld [smem:[#allocation0]]
  $region50: #{tpu_custom_call.1} parent=0
    _
  %s10 = ssub.s32 1, %s8
  %s11 = scalar_select 0, %s10, %s8
  $region1: #{tpu_custom_call.1} parent=0
    #allocation3 [shape = 'u8[8192]{0}', space=vmem, size = 0x2000, scoped, tag = 'input window, operand 1, single buffered']
    #allocation4 [shape = 's32[1]{0}', space=sflag, size = 0x4, scoped, tag = 'scoped memory for tpu_custom_call.1']
    #allocation5 [shape = 's32[1]{0}', space=sflag, size = 0x4, scoped, tag = 'scoped memory for tpu_custom_call.1']
    #allocation6 [shape = 'u8[49152]{0}', space=vmem, size = 0xc000, scoped, tag = 'input window, operand 3, single buffered']
    #allocation7 [shape = 's32[1]{0}', space=sflag, size = 0x4, scoped, tag = 'scoped memory for tpu_custom_call.1']
    #allocation8 [shape = 'u8[196608]{0}', space=vmem, size = 0x30000, scoped, tag = 'input window, operand 4, single buffered']
    #allocation9 [shape = 'u8[4096]{0}', space=vmem, size = 0x1000, scoped, tag = 'output window, operand 0, single buffered']
    %12 = vsyncpa [#allocation4], 0
    %13 = vsyncpa [#allocation7], 0
    %14 = vsyncpa [#allocation5], 0
    // Predicated region
    $region2: #{tpu_custom_call.1} parent=1 // pred_check
      _
    $region3: #{tpu_custom_call.1} parent=1 // pred_check_branch
      %16 = sbr.rel (0) target = $region5
    $region4: #{tpu_custom_call.1} parent=1 // pred_region
      _
    $region5: #{tpu_custom_call.1} parent=1 // pred_fallthru
      _
    // Predicated region
    $region6: #{tpu_custom_call.1} parent=1 // pred_check
      _
    $region7: #{tpu_custom_call.1} parent=1 // pred_check_branch
      %18 = sbr.rel (0) target = $region9
    $region8: #{tpu_custom_call.1} parent=1 // pred_region
      %s20 = ssub.s32 256, 256
      %21 = vsyncadd [#allocation4], %s20
      %s22 = sshll.u32 [#allocation3], 4
      %s23 = int_to_ptr.vmem [resolvable:$true] %s22
      %28 = dma.hbm_to_vmem [thread:$0]  %s1, 256, %s23, [#allocation4], 128, 128, 8
    $region9: #{tpu_custom_call.1} parent=1 // pred_fallthru
      _
    // Predicated region
    $region10: #{tpu_custom_call.1} parent=1 // pred_check
      _
    $region11: #{tpu_custom_call.1} parent=1 // pred_check_branch
      %30 = sbr.rel (0) target = $region13
    $region12: #{tpu_custom_call.1} parent=1 // pred_region
      _
    $region13: #{tpu_custom_call.1} parent=1 // pred_fallthru
      _
    // Predicated region
    $region14: #{tpu_custom_call.1} parent=1 // pred_check
      _
    $region15: #{tpu_custom_call.1} parent=1 // pred_check_branch
      %32 = sbr.rel (0) target = $region17
    $region16: #{tpu_custom_call.1} parent=1 // pred_region
      %s34 = ssub.s32 1536, 1536
      %35 = vsyncadd [#allocation7], %s34
      %s36 = sshll.u32 [#allocation6], 4
      %s37 = int_to_ptr.vmem [resolvable:$true] %s36
      %42 = dma.hbm_to_vmem [thread:$0]  %s3, 1536, %s37, [#allocation7], 384, 384, 24
    $region17: #{tpu_custom_call.1} parent=1 // pred_fallthru
      _
    // Predicated region
    $region18: #{tpu_custom_call.1} parent=1 // pred_check
      _
    $region19: #{tpu_custom_call.1} parent=1 // pred_check_branch
      %44 = sbr.rel (0) target = $region21
    $region20: #{tpu_custom_call.1} parent=1 // pred_region
      %s46 = ssub.s32 6144, 6144
      %47 = vsyncadd [#allocation7], %s46
      %s48 = sshll.u32 [#allocation8], 4
      %s49 = int_to_ptr.vmem [resolvable:$true] %s48
      %54 = dma.hbm_to_vmem [thread:$0]  %s4, 6144, %s49, [#allocation7], 384, 384, 24
    $region21: #{tpu_custom_call.1} parent=1 // pred_fallthru
      _
    // Predicated region
    $region22: #{tpu_custom_call.1} parent=1 // pred_check
      _
    $region23: #{tpu_custom_call.1} parent=1 // pred_check_branch
      %56 = sbr.rel (0) target = $region25
    $region24: #{tpu_custom_call.1} parent=1 // pred_region
      _
    $region25: #{tpu_custom_call.1} parent=1 // pred_fallthru
      _
    // Predicated region
    $region26: #{tpu_custom_call.1} parent=1 // pred_check
      _
    $region27: #{tpu_custom_call.1} parent=1 // pred_check_branch
      %58 = sbr.rel (0) target = $region29
    $region28: #{tpu_custom_call.1} parent=1 // pred_region
      _
    $region29: #{tpu_custom_call.1} parent=1 // pred_fallthru
      _
    // Predicated region
    $region30: #{tpu_custom_call.1} parent=1 // pred_check
      _
    $region31: #{tpu_custom_call.1} parent=1 // pred_check_branch
      %60 = sbr.rel (0) target = $region33
    $region32: #{tpu_custom_call.1} parent=1 // pred_region
      %61 = dma.done [#allocation4], 256
    $region33: #{tpu_custom_call.1} parent=1 // pred_fallthru
      _
    // Predicated region
    $region34: #{tpu_custom_call.1} parent=1 // pred_check
      _
    $region35: #{tpu_custom_call.1} parent=1 // pred_check_branch
      %63 = sbr.rel (0) target = $region37
    $region36: #{tpu_custom_call.1} parent=1 // pred_region
      %64 = dma.done [#allocation7], 1536
    $region37: #{tpu_custom_call.1} parent=1 // pred_fallthru
      _
    // Predicated region
    $region38: #{tpu_custom_call.1} parent=1 // pred_check
      _
    $region39: #{tpu_custom_call.1} parent=1 // pred_check_branch
      %66 = sbr.rel (0) target = $region41
    $region40: #{tpu_custom_call.1} parent=1 // pred_region
      %67 = dma.done [#allocation7], 6144
    $region41: #{tpu_custom_call.1} parent=1 // pred_fallthru
      _
    %v68 = vlaneseq
    %v69 = vand.u32 %v68, 127
    %v70 = vld [vmem:[%s0] sm:$0xff]
    %71 = vset.pattern.permute.xlu0 0
    %72 = vperm.xlu0 %71, %v70
    %v73 = vpop.permute.xlu0 %72
    %vm74 = vcmp.eq.s32.totalorder %v69, %v73
    %v75 = vsel %vm74, 1, 0
    %v76 = vcvt.s32.f32 %v75
    %v77 = vld [vmem:[#allocation3] sm:$0xff]
    %v78 = vld [vmem:[#allocation3 + $0x8] sm:$0xff]
    %vm79 = vcmask 130048
    %v81 = vsel %vm79, %v76, 0
    %83 = vmatprep.subr.mxu0 0.0
    %84 = vmatpush1.msra.mxu0 0.0
    %85 = vmatprep.subr.mxu0 0.0
    %86 = vmatpush1.msra.mxu0 0.0
    %87 = vmatprep.subr.mxu0 0.0
    %88 = vmatpush1.msra.mxu0 0.0
    %89 = vmatprep.subr.mxu0 0.0
    %90 = vmatpush1.msra.mxu0 0.0
    %91 = vmatprep.subr.mxu0 0.0
    %92 = vmatpush1.msra.mxu0 0.0
    %93 = vmatprep.subr.mxu0 0.0
    %94 = vmatpush1.msra.mxu0 0.0
    %95 = vmatprep.subr.mxu0 0.0
    %96 = vmatpush1.msra.mxu0 0.0
    %97 = vmatprep.subr.mxu0 0.0
    %98 = vmatpush1.msra.mxu0 0.0
    %99 = vmatprep.subr.mxu0 0.0
    %100 = vmatpush1.msra.mxu0 0.0
    %101 = vmatprep.subr.mxu0 0.0
    %102 = vmatpush1.msra.mxu0 0.0
    %103 = vmatprep.subr.mxu0 0.0
    %104 = vmatpush1.msra.mxu0 0.0
    %105 = vmatprep.subr.mxu0 0.0
    %106 = vmatpush1.msra.mxu0 0.0
    %107 = vmatprep.subr.mxu0 0.0
    %108 = vmatpush1.msra.mxu0 0.0
    %109 = vmatprep.subr.mxu0 0.0
    %110 = vmatpush1.msra.mxu0 0.0
    %111 = vmatprep.subr.mxu0 0.0
    %112 = vmatpush1.msra.mxu0 %v78
    %113 = vmatprep.subr.mxu0 0.0
    %114 = vmatpush1.msra.mxu0 %v77
    %115 = vmatprep.subr.mxu0 0.0
    %116 = vmatpush2.msra.mxu0 0.0
    %117 = vmatprep.subr.mxu0 0.0
    %118 = vmatpush2.msra.mxu0 0.0
    %119 = vmatprep.subr.mxu0 0.0
    %120 = vmatpush2.msra.mxu0 0.0
    %121 = vmatprep.subr.mxu0 0.0
    %122 = vmatpush2.msra.mxu0 0.0
    %123 = vmatprep.subr.mxu0 0.0
    %124 = vmatpush2.msra.mxu0 0.0
    %125 = vmatprep.subr.mxu0 0.0
    %126 = vmatpush2.msra.mxu0 0.0
    %127 = vmatprep.subr.mxu0 0.0
    %128 = vmatpush2.msra.mxu0 0.0
    %129 = vmatprep.subr.mxu0 0.0
    %130 = vmatpush2.msra.mxu0 0.0
    %131 = vmatprep.subr.mxu0 0.0
    %132 = vmatpush2.msra.mxu0 0.0
    %133 = vmatprep.subr.mxu0 0.0
    %134 = vmatpush2.msra.mxu0 0.0
    %135 = vmatprep.subr.mxu0 0.0
    %136 = vmatpush2.msra.mxu0 0.0
    %137 = vmatprep.subr.mxu0 0.0
    %138 = vmatpush2.msra.mxu0 0.0
    %139 = vmatprep.subr.mxu0 0.0
    %140 = vmatpush2.msra.mxu0 0.0
    %141 = vmatprep.subr.mxu0 0.0
    %142 = vmatpush2.msra.mxu0 0.0
    %143 = vmatprep.subr.mxu0 0.0
    %144 = vmatpush2.msra.mxu0 0.0
    %145 = vmatprep.subr.mxu0 0.0
    %146 = vmatpush2.msra.mxu0 0.0
    %147 = vmatprep.mubr.f32.mxu0 0.0
    %148 = vmatmul.mubr.f32.gmra.mxu0 %v81
    %v149 = vpop.f32.mrf.mxu0
    %v150 = vadd.f32 0.0, %v149
    %v151 = vpop.f32.mrf.mxu0
    %152 = vdwg.mxu0
    %v153 = vld [vmem:[#allocation6] sm:$0xff]
    %v154 = vld [vmem:[#allocation6 + $0x8] sm:$0xff]
    %v155 = vld [vmem:[#allocation6 + $0x10] sm:$0xff]
    %v156 = vld [vmem:[#allocation6 + $0x18] sm:$0xff]
    %v157 = vld [vmem:[#allocation6 + $0x20] sm:$0xff]
    %v158 = vld [vmem:[#allocation6 + $0x28] sm:$0xff]
    %v159 = vld [vmem:[#allocation6 + $0x30] sm:$0xff]
    %v160 = vld [vmem:[#allocation6 + $0x38] sm:$0xff]
    %v161 = vld [vmem:[#allocation6 + $0x40] sm:$0xff]
    %v162 = vld [vmem:[#allocation6 + $0x48] sm:$0xff]
    %v163 = vld [vmem:[#allocation6 + $0x50] sm:$0xff]
    %v164 = vld [vmem:[#allocation6 + $0x58] sm:$0xff]
    %v165 = vld [vmem:[%s5] sm:$0x7]
    %v167 = vlaneseq
    %v168 = vshrl.u32 %v167, 7
    %v169 = vsub.s32 0, %v168
    %v170 = vrot.slane %v165, %v169
    %v171 = vlaneseq
    %v172 = vshrl.u32 %v171, 7
    %v173 = vsub.s32 1, %v172
    %v174 = vrot.slane %v165, %v173
    %v175 = vlaneseq
    %v176 = vshrl.u32 %v175, 7
    %v177 = vsub.s32 2, %v176
    %v178 = vrot.slane %v165, %v177
    %vm182 = vcmask 261120
    %v184 = vsel %vm182, %v150, 0
    %186 = vmatprep.subr.mxu0 0.0
    %187 = vmatpush1.msra.mxu0 0.0
    %188 = vmatprep.subr.mxu0 0.0
    %189 = vmatpush1.msra.mxu0 0.0
    %190 = vmatprep.subr.mxu0 0.0
    %191 = vmatpush1.msra.mxu0 0.0
    %192 = vmatprep.subr.mxu0 0.0
    %193 = vmatpush1.msra.mxu0 0.0
    %194 = vmatprep.subr.mxu0 0.0
    %195 = vmatpush1.msra.mxu0 0.0
    %196 = vmatprep.subr.mxu0 0.0
    %197 = vmatpush1.msra.mxu0 0.0
    %198 = vmatprep.subr.mxu0 0.0
    %199 = vmatpush1.msra.mxu0 0.0
    %200 = vmatprep.subr.mxu0 0.0
    %201 = vmatpush1.msra.mxu0 0.0
    %202 = vmatprep.subr.mxu0 0.0
    %203 = vmatpush1.msra.mxu0 0.0
    %204 = vmatprep.subr.mxu0 0.0
    %205 = vmatpush1.msra.mxu0 0.0
    %206 = vmatprep.subr.mxu0 0.0
    %207 = vmatpush1.msra.mxu0 0.0
    %208 = vmatprep.subr.mxu0 0.0
    %209 = vmatpush1.msra.mxu0 0.0
    %210 = vmatprep.subr.mxu0 %v163
    %211 = vmatpush1.msra.mxu0 %v162
    %212 = vmatprep.subr.mxu0 %v160
    %213 = vmatpush1.msra.mxu0 %v159
    %214 = vmatprep.subr.mxu0 %v157
    %215 = vmatpush1.msra.mxu0 %v156
    %216 = vmatprep.subr.mxu0 %v154
    %217 = vmatpush1.msra.mxu0 %v153
    %218 = vmatprep.subr.mxu0 0.0
    %219 = vmatpush2.msra.mxu0 0.0
    %220 = vmatprep.subr.mxu0 0.0
    %221 = vmatpush2.msra.mxu0 0.0
    %222 = vmatprep.subr.mxu0 0.0
    %223 = vmatpush2.msra.mxu0 0.0
    %224 = vmatprep.subr.mxu0 0.0
    %225 = vmatpush2.msra.mxu0 0.0
    %226 = vmatprep.subr.mxu0 0.0
    %227 = vmatpush2.msra.mxu0 0.0
    %228 = vmatprep.subr.mxu0 0.0
    %229 = vmatpush2.msra.mxu0 0.0
    %230 = vmatprep.subr.mxu0 0.0
    %231 = vmatpush2.msra.mxu0 0.0
    %232 = vmatprep.subr.mxu0 0.0
    %233 = vmatpush2.msra.mxu0 0.0
    %234 = vmatprep.subr.mxu0 0.0
    %235 = vmatpush2.msra.mxu0 0.0
    %236 = vmatprep.subr.mxu0 0.0
    %237 = vmatpush2.msra.mxu0 0.0
    %238 = vmatprep.subr.mxu0 0.0
    %239 = vmatpush2.msra.mxu0 0.0
    %240 = vmatprep.subr.mxu0 0.0
    %241 = vmatpush2.msra.mxu0 0.0
    %242 = vmatprep.subr.mxu0 0.0
    %243 = vmatpush2.msra.mxu0 0.0
    %244 = vmatprep.subr.mxu0 0.0
    %245 = vmatpush2.msra.mxu0 0.0
    %246 = vmatprep.subr.mxu0 0.0
    %247 = vmatpush2.msra.mxu0 0.0
    %248 = vmatprep.subr.mxu0 0.0
    %249 = vmatpush2.msra.mxu0 0.0
    %250 = vmatprep.mubr.f32.mxu0 0.0
    %251 = vmatmul.mubr.f32.gmra.mxu0 %v184
    %v252 = vpop.f32.mrf.mxu0
    %v253 = vadd.f32 %v170, %v252
    %v254 = vpop.f32.mrf.mxu0
    %v255 = vadd.f32 %v174, %v254
    %256 = vdwg.mxu0
    %257 = vmatprep.subr.mxu0 0.0
    %258 = vmatpush1.msra.mxu0 0.0
    %259 = vmatprep.subr.mxu0 0.0
    %260 = vmatpush1.msra.mxu0 0.0
    %261 = vmatprep.subr.mxu0 0.0
    %262 = vmatpush1.msra.mxu0 0.0
    %263 = vmatprep.subr.mxu0 0.0
    %264 = vmatpush1.msra.mxu0 0.0
    %265 = vmatprep.subr.mxu0 0.0
    %266 = vmatpush1.msra.mxu0 0.0
    %267 = vmatprep.subr.mxu0 0.0
    %268 = vmatpush1.msra.mxu0 0.0
    %269 = vmatprep.subr.mxu0 0.0
    %270 = vmatpush1.msra.mxu0 0.0
    %271 = vmatprep.subr.mxu0 0.0
    %272 = vmatpush1.msra.mxu0 0.0
    %273 = vmatprep.subr.mxu0 0.0
    %274 = vmatpush1.msra.mxu0 0.0
    %275 = vmatprep.subr.mxu0 0.0
    %276 = vmatpush1.msra.mxu0 0.0
    %277 = vmatprep.subr.mxu0 0.0
    %278 = vmatpush1.msra.mxu0 0.0
    %279 = vmatprep.subr.mxu0 0.0
    %280 = vmatpush1.msra.mxu0 0.0
    %281 = vmatprep.subr.mxu0 0.0
    %282 = vmatpush1.msra.mxu0 %v164
    %283 = vmatprep.subr.mxu0 0.0
    %284 = vmatpush1.msra.mxu0 %v161
    %285 = vmatprep.subr.mxu0 0.0
    %286 = vmatpush1.msra.mxu0 %v158
    %287 = vmatprep.subr.mxu0 0.0
    %288 = vmatpush1.msra.mxu0 %v155
    %289 = vmatprep.subr.mxu0 0.0
    %290 = vmatpush2.msra.mxu0 0.0
    %291 = vmatprep.subr.mxu0 0.0
    %292 = vmatpush2.msra.mxu0 0.0
    %293 = vmatprep.subr.mxu0 0.0
    %294 = vmatpush2.msra.mxu0 0.0
    %295 = vmatprep.subr.mxu0 0.0
    %296 = vmatpush2.msra.mxu0 0.0
    %297 = vmatprep.subr.mxu0 0.0
    %298 = vmatpush2.msra.mxu0 0.0
    %299 = vmatprep.subr.mxu0 0.0
    %300 = vmatpush2.msra.mxu0 0.0
    %301 = vmatprep.subr.mxu0 0.0
    %302 = vmatpush2.msra.mxu0 0.0
    %303 = vmatprep.subr.mxu0 0.0
    %304 = vmatpush2.msra.mxu0 0.0
    %305 = vmatprep.subr.mxu0 0.0
    %306 = vmatpush2.msra.mxu0 0.0
    %307 = vmatprep.subr.mxu0 0.0
    %308 = vmatpush2.msra.mxu0 0.0
    %309 = vmatprep.subr.mxu0 0.0
    %310 = vmatpush2.msra.mxu0 0.0
    %311 = vmatprep.subr.mxu0 0.0
    %312 = vmatpush2.msra.mxu0 0.0
    %313 = vmatprep.subr.mxu0 0.0
    %314 = vmatpush2.msra.mxu0 0.0
    %315 = vmatprep.subr.mxu0 0.0
    %316 = vmatpush2.msra.mxu0 0.0
    %317 = vmatprep.subr.mxu0 0.0
    %318 = vmatpush2.msra.mxu0 0.0
    %319 = vmatprep.subr.mxu0 0.0
    %320 = vmatpush2.msra.mxu0 0.0
    %321 = vmatprep.mubr.f32.mxu0 0.0
    %322 = vmatmul.mubr.f32.gmra.mxu0 %v184
    %v323 = vpop.f32.mrf.mxu0
    %v324 = vadd.f32 %v178, %v323
    %v325 = vpop.f32.mrf.mxu0
    %326 = vdwg.mxu0
    %327 = vst [vmem:[#allocation2] sm:$0xff] %v253
    %328 = vst [vmem:[#allocation2 + $0x8] sm:$0xff] %v255
    %329 = vst [vmem:[#allocation2 + $0x10] sm:$0xff] %v324
    %v330 = vld [vmem:[%s6] sm:$0x1]
    %v331 = vld [vmem:[%s2] sm:$0x1]
    %v332 = vld [vmem:[#allocation2] ss:$8 sm:$0x7]
    %v333 = vld [vmem:[#allocation8] sm:$0xff]
    %v334 = vld [vmem:[#allocation8 + $0x8] sm:$0xff]
    %v335 = vld [vmem:[#allocation8 + $0x10] sm:$0xff]
    %v336 = vld [vmem:[#allocation8 + $0x18] sm:$0xff]
    %v337 = vld [vmem:[#allocation8 + $0x20] sm:$0xff]
    %v338 = vld [vmem:[#allocation8 + $0x28] sm:$0xff]
    %v339 = vld [vmem:[#allocation8 + $0x30] sm:$0xff]
    %v340 = vld [vmem:[#allocation8 + $0x38] sm:$0xff]
    %v341 = vld [vmem:[#allocation8 + $0x40] sm:$0xff]
    %v342 = vld [vmem:[#allocation8 + $0x48] sm:$0xff]
    %v343 = vld [vmem:[#allocation8 + $0x50] sm:$0xff]
    %v344 = vld [vmem:[#allocation8 + $0x58] sm:$0xff]
    %v345 = vld [vmem:[#allocation8 + $0x60] sm:$0xff]
    %v346 = vld [vmem:[#allocation8 + $0x68] sm:$0xff]
    %v347 = vld [vmem:[#allocation8 + $0x70] sm:$0xff]
    %v348 = vld [vmem:[#allocation8 + $0x78] sm:$0xff]
    %v349 = vld [vmem:[#allocation8 + $0x80] sm:$0xff]
    %v350 = vld [vmem:[#allocation8 + $0x88] sm:$0xff]
    %v351 = vld [vmem:[#allocation8 + $0x90] sm:$0xff]
    %v352 = vld [vmem:[#allocation8 + $0x98] sm:$0xff]
    %v353 = vld [vmem:[#allocation8 + $0xa0] sm:$0xff]
    %v354 = vld [vmem:[#allocation8 + $0xa8] sm:$0xff]
    %v355 = vld [vmem:[#allocation8 + $0xb0] sm:$0xff]
    %v356 = vld [vmem:[#allocation8 + $0xb8] sm:$0xff]
    %v357 = vld [vmem:[#allocation8 + $0xc0] sm:$0xff]
    %v358 = vld [vmem:[#allocation8 + $0xc8] sm:$0xff]
    %v359 = vld [vmem:[#allocation8 + $0xd0] sm:$0xff]
    %v360 = vld [vmem:[#allocation8 + $0xd8] sm:$0xff]
    %v361 = vld [vmem:[#allocation8 + $0xe0] sm:$0xff]
    %v362 = vld [vmem:[#allocation8 + $0xe8] sm:$0xff]
    %v363 = vld [vmem:[#allocation8 + $0xf0] sm:$0xff]
    %v364 = vld [vmem:[#allocation8 + $0xf8] sm:$0xff]
    %v365 = vld [vmem:[#allocation8 + $0x100] sm:$0xff]
    %v366 = vld [vmem:[#allocation8 + $0x108] sm:$0xff]
    %v367 = vld [vmem:[#allocation8 + $0x110] sm:$0xff]
    %v368 = vld [vmem:[#allocation8 + $0x118] sm:$0xff]
    %v369 = vld [vmem:[#allocation8 + $0x120] sm:$0xff]
    %v370 = vld [vmem:[#allocation8 + $0x128] sm:$0xff]
    %v371 = vld [vmem:[#allocation8 + $0x130] sm:$0xff]
    %v372 = vld [vmem:[#allocation8 + $0x138] sm:$0xff]
    %v373 = vld [vmem:[#allocation8 + $0x140] sm:$0xff]
    %v374 = vld [vmem:[#allocation8 + $0x148] sm:$0xff]
    %v375 = vld [vmem:[#allocation8 + $0x150] sm:$0xff]
    %v376 = vld [vmem:[#allocation8 + $0x158] sm:$0xff]
    %v377 = vld [vmem:[#allocation8 + $0x160] sm:$0xff]
    %v378 = vld [vmem:[#allocation8 + $0x168] sm:$0xff]
    %v379 = vld [vmem:[#allocation8 + $0x170] sm:$0xff]
    %v380 = vld [vmem:[#allocation8 + $0x178] sm:$0xff]
    %381 = vmatprep.subr.mxu0 %v379
    %382 = vmatpush1.msra.mxu0 %v378
    %383 = vmatprep.subr.mxu0 %v376
    %384 = vmatpush1.msra.mxu0 %v375
    %385 = vmatprep.subr.mxu0 %v373
    %386 = vmatpush1.msra.mxu0 %v372
    %387 = vmatprep.subr.mxu0 %v370
    %388 = vmatpush1.msra.mxu0 %v369
    %389 = vmatprep.subr.mxu0 %v367
    %390 = vmatpush1.msra.mxu0 %v366
    %391 = vmatprep.subr.mxu0 %v364
    %392 = vmatpush1.msra.mxu0 %v363
    %393 = vmatprep.subr.mxu0 %v361
    %394 = vmatpush1.msra.mxu0 %v360
    %395 = vmatprep.subr.mxu0 %v358
    %396 = vmatpush1.msra.mxu0 %v357
    %397 = vmatprep.subr.mxu0 %v355
    %398 = vmatpush1.msra.mxu0 %v354
    %399 = vmatprep.subr.mxu0 %v352
    %400 = vmatpush1.msra.mxu0 %v351
    %401 = vmatprep.subr.mxu0 %v349
    %402 = vmatpush1.msra.mxu0 %v348
    %403 = vmatprep.subr.mxu0 %v346
    %404 = vmatpush1.msra.mxu0 %v345
    %405 = vmatprep.subr.mxu0 %v343
    %406 = vmatpush1.msra.mxu0 %v342
    %407 = vmatprep.subr.mxu0 %v340
    %408 = vmatpush1.msra.mxu0 %v339
    %409 = vmatprep.subr.mxu0 %v337
    %410 = vmatpush1.msra.mxu0 %v336
    %411 = vmatprep.subr.mxu0 %v334
    %412 = vmatpush1.msra.mxu0 %v333
    %413 = vmatprep.subr.mxu0 0.0
    %414 = vmatpush2.msra.mxu0 0.0
    %415 = vmatprep.subr.mxu0 0.0
    %416 = vmatpush2.msra.mxu0 0.0
    %417 = vmatprep.subr.mxu0 0.0
    %418 = vmatpush2.msra.mxu0 0.0
    %419 = vmatprep.subr.mxu0 0.0
    %420 = vmatpush2.msra.mxu0 0.0
    %421 = vmatprep.subr.mxu0 0.0
    %422 = vmatpush2.msra.mxu0 0.0
    %423 = vmatprep.subr.mxu0 0.0
    %424 = vmatpush2.msra.mxu0 0.0
    %425 = vmatprep.subr.mxu0 0.0
    %426 = vmatpush2.msra.mxu0 0.0
    %427 = vmatprep.subr.mxu0 0.0
    %428 = vmatpush2.msra.mxu0 0.0
    %429 = vmatprep.subr.mxu0 0.0
    %430 = vmatpush2.msra.mxu0 0.0
    %431 = vmatprep.subr.mxu0 0.0
    %432 = vmatpush2.msra.mxu0 0.0
    %433 = vmatprep.subr.mxu0 0.0
    %434 = vmatpush2.msra.mxu0 0.0
    %435 = vmatprep.subr.mxu0 0.0
    %436 = vmatpush2.msra.mxu0 0.0
    %437 = vmatprep.subr.mxu0 0.0
    %438 = vmatpush2.msra.mxu0 0.0
    %439 = vmatprep.subr.mxu0 0.0
    %440 = vmatpush2.msra.mxu0 0.0
    %441 = vmatprep.subr.mxu0 0.0
    %442 = vmatpush2.msra.mxu0 0.0
    %443 = vmatprep.subr.mxu0 0.0
    %444 = vmatpush2.msra.mxu0 0.0
    %445 = vmatprep.mubr.f32.mxu0 0.0
    %446 = vmatmul.mubr.f32.gmra.mxu0 %v331
    %v447 = vpop.f32.mrf.mxu0
    %v448 = vadd.f32 0.0, %v447
    %v449 = vpop.f32.mrf.mxu0
    %v450 = vadd.f32 0.0, %v449
    %451 = vdwg.mxu0
    %452 = vmatprep.subr.mxu0 0.0
    %453 = vmatpush1.msra.mxu0 %v380
    %454 = vmatprep.subr.mxu0 0.0
    %455 = vmatpush1.msra.mxu0 %v377
    %456 = vmatprep.subr.mxu0 0.0
    %457 = vmatpush1.msra.mxu0 %v374
    %458 = vmatprep.subr.mxu0 0.0
    %459 = vmatpush1.msra.mxu0 %v371
    %460 = vmatprep.subr.mxu0 0.0
    %461 = vmatpush1.msra.mxu0 %v368
    %462 = vmatprep.subr.mxu0 0.0
    %463 = vmatpush1.msra.mxu0 %v365
    %464 = vmatprep.subr.mxu0 0.0
    %465 = vmatpush1.msra.mxu0 %v362
    %466 = vmatprep.subr.mxu0 0.0
    %467 = vmatpush1.msra.mxu0 %v359
    %468 = vmatprep.subr.mxu0 0.0
    %469 = vmatpush1.msra.mxu0 %v356
    %470 = vmatprep.subr.mxu0 0.0
    %471 = vmatpush1.msra.mxu0 %v353
    %472 = vmatprep.subr.mxu0 0.0
    %473 = vmatpush1.msra.mxu0 %v350
    %474 = vmatprep.subr.mxu0 0.0
    %475 = vmatpush1.msra.mxu0 %v347
    %476 = vmatprep.subr.mxu0 0.0
    %477 = vmatpush1.msra.mxu0 %v344
    %478 = vmatprep.subr.mxu0 0.0
    %479 = vmatpush1.msra.mxu0 %v341
    %480 = vmatprep.subr.mxu0 0.0
    %481 = vmatpush1.msra.mxu0 %v338
    %482 = vmatprep.subr.mxu0 0.0
    %483 = vmatpush1.msra.mxu0 %v335
    %484 = vmatprep.subr.mxu0 0.0
    %485 = vmatpush2.msra.mxu0 0.0
    %486 = vmatprep.subr.mxu0 0.0
    %487 = vmatpush2.msra.mxu0 0.0
    %488 = vmatprep.subr.mxu0 0.0
    %489 = vmatpush2.msra.mxu0 0.0
    %490 = vmatprep.subr.mxu0 0.0
    %491 = vmatpush2.msra.mxu0 0.0
    %492 = vmatprep.subr.mxu0 0.0
    %493 = vmatpush2.msra.mxu0 0.0
    %494 = vmatprep.subr.mxu0 0.0
    %495 = vmatpush2.msra.mxu0 0.0
    %496 = vmatprep.subr.mxu0 0.0
    %497 = vmatpush2.msra.mxu0 0.0
    %498 = vmatprep.subr.mxu0 0.0
    %499 = vmatpush2.msra.mxu0 0.0
    %500 = vmatprep.subr.mxu0 0.0
    %501 = vmatpush2.msra.mxu0 0.0
    %502 = vmatprep.subr.mxu0 0.0
    %503 = vmatpush2.msra.mxu0 0.0
    %504 = vmatprep.subr.mxu0 0.0
    %505 = vmatpush2.msra.mxu0 0.0
    %506 = vmatprep.subr.mxu0 0.0
    %507 = vmatpush2.msra.mxu0 0.0
    %508 = vmatprep.subr.mxu0 0.0
    %509 = vmatpush2.msra.mxu0 0.0
    %510 = vmatprep.subr.mxu0 0.0
    %511 = vmatpush2.msra.mxu0 0.0
    %512 = vmatprep.subr.mxu0 0.0
    %513 = vmatpush2.msra.mxu0 0.0
    %514 = vmatprep.subr.mxu0 0.0
    %515 = vmatpush2.msra.mxu0 0.0
    %516 = vmatprep.mubr.f32.mxu0 0.0
    %517 = vmatmul.mubr.f32.gmra.mxu0 %v331
    %v518 = vpop.f32.mrf.mxu0
    %v519 = vadd.f32 0.0, %v518
    %v520 = vpop.f32.mrf.mxu0
    %521 = vdwg.mxu0
    %v522 = vadd.f32 %v332, %v448
    %v523 = vxor.u32 %v522, 2147483648
    %v524 = vmul.f32 %v523, 1.442695
    %v525 = vpow.pop %v524
    %v526 = vadd.f32 %v525, 1.0
    %v527 = vrcp.pop %v526
    %v528 = vmul.f32 1.0, %v527
    %v530 = vrot.slane %v332, 1
    %v532 = vadd.f32 %v530, %v450
    %v533 = vxor.u32 %v532, 2147483648
    %v534 = vmul.f32 %v533, 1.442695
    %v535 = vpow.pop %v534
    %v536 = vadd.f32 %v535, 1.0
    %v537 = vrcp.pop %v536
    %v538 = vmul.f32 1.0, %v537
    %v539 = vadd.f32 %v519, %v330
    %v540 = vmul.f32 %v528, %v539
    %v541 = vrot.slane %v332, 2
    %v543 = vadd.f32 %v541, %v540
    %v544 = vtanh.pop %v543
    %v545 = vsub.f32 1.0, %v538
    %v546 = vmul.f32 %v545, %v544
    %v547 = vmul.f32 %v538, %v331
    %v548 = vadd.f32 %v546, %v547
    %549 = vst [vmem:[#allocation9] sm:$0x1] %v548
    %s550 = scalar_lea.vmem [#allocation2], 1
    %v551 = vld [vmem:[%s550] ss:$8 sm:$0x7]
    %v552 = vld [vmem:[#allocation8] sm:$0xff]
    %v553 = vld [vmem:[#allocation8 + $0x8] sm:$0xff]
    %v554 = vld [vmem:[#allocation8 + $0x10] sm:$0xff]
    %v555 = vld [vmem:[#allocation8 + $0x18] sm:$0xff]
    %v556 = vld [vmem:[#allocation8 + $0x20] sm:$0xff]
    %v557 = vld [vmem:[#allocation8 + $0x28] sm:$0xff]
    %v558 = vld [vmem:[#allocation8 + $0x30] sm:$0xff]
    %v559 = vld [vmem:[#allocation8 + $0x38] sm:$0xff]
    %v560 = vld [vmem:[#allocation8 + $0x40] sm:$0xff]
    %v561 = vld [vmem:[#allocation8 + $0x48] sm:$0xff]
    %v562 = vld [vmem:[#allocation8 + $0x50] sm:$0xff]
    %v563 = vld [vmem:[#allocation8 + $0x58] sm:$0xff]
    %v564 = vld [vmem:[#allocation8 + $0x60] sm:$0xff]
    %v565 = vld [vmem:[#allocation8 + $0x68] sm:$0xff]
    %v566 = vld [vmem:[#allocation8 + $0x70] sm:$0xff]
    %v567 = vld [vmem:[#allocation8 + $0x78] sm:$0xff]
    %v568 = vld [vmem:[#allocation8 + $0x80] sm:$0xff]
    %v569 = vld [vmem:[#allocation8 + $0x88] sm:$0xff]
    %v570 = vld [vmem:[#allocation8 + $0x90] sm:$0xff]
    %v571 = vld [vmem:[#allocation8 + $0x98] sm:$0xff]
    %v572 = vld [vmem:[#allocation8 + $0xa0] sm:$0xff]
    %v573 = vld [vmem:[#allocation8 + $0xa8] sm:$0xff]
    %v574 = vld [vmem:[#allocation8 + $0xb0] sm:$0xff]
    %v575 = vld [vmem:[#allocation8 + $0xb8] sm:$0xff]
    %v576 = vld [vmem:[#allocation8 + $0xc0] sm:$0xff]
    %v577 = vld [vmem:[#allocation8 + $0xc8] sm:$0xff]
    %v578 = vld [vmem:[#allocation8 + $0xd0] sm:$0xff]
    %v579 = vld [vmem:[#allocation8 + $0xd8] sm:$0xff]
    %v580 = vld [vmem:[#allocation8 + $0xe0] sm:$0xff]
    %v581 = vld [vmem:[#allocation8 + $0xe8] sm:$0xff]
    %v582 = vld [vmem:[#allocation8 + $0xf0] sm:$0xff]
    %v583 = vld [vmem:[#allocation8 + $0xf8] sm:$0xff]
    %v584 = vld [vmem:[#allocation8 + $0x100] sm:$0xff]
    %v585 = vld [vmem:[#allocation8 + $0x108] sm:$0xff]
    %v586 = vld [vmem:[#allocation8 + $0x110] sm:$0xff]
    %v587 = vld [vmem:[#allocation8 + $0x118] sm:$0xff]
    %v588 = vld [vmem:[#allocation8 + $0x120] sm:$0xff]
    %v589 = vld [vmem:[#allocation8 + $0x128] sm:$0xff]
    %v590 = vld [vmem:[#allocation8 + $0x130] sm:$0xff]
    %v591 = vld [vmem:[#allocation8 + $0x138] sm:$0xff]
    %v592 = vld [vmem:[#allocation8 + $0x140] sm:$0xff]
    %v593 = vld [vmem:[#allocation8 + $0x148] sm:$0xff]
    %v594 = vld [vmem:[#allocation8 + $0x150] sm:$0xff]
    %v595 = vld [vmem:[#allocation8 + $0x158] sm:$0xff]
    %v596 = vld [vmem:[#allocation8 + $0x160] sm:$0xff]
    %v597 = vld [vmem:[#allocation8 + $0x168] sm:$0xff]
    %v598 = vld [vmem:[#allocation8 + $0x170] sm:$0xff]
    %v599 = vld [vmem:[#allocation8 + $0x178] sm:$0xff]
    %600 = vmatprep.subr.mxu0 %v598
    %601 = vmatpush1.msra.mxu0 %v597
    %602 = vmatprep.subr.mxu0 %v595
    %603 = vmatpush1.msra.mxu0 %v594
    %604 = vmatprep.subr.mxu0 %v592
    %605 = vmatpush1.msra.mxu0 %v591
    %606 = vmatprep.subr.mxu0 %v589
    %607 = vmatpush1.msra.mxu0 %v588
    %608 = vmatprep.subr.mxu0 %v586
    %609 = vmatpush1.msra.mxu0 %v585
    %610 = vmatprep.subr.mxu0 %v583
    %611 = vmatpush1.msra.mxu0 %v582
    %612 = vmatprep.subr.mxu0 %v580
    %613 = vmatpush1.msra.mxu0 %v579
    %614 = vmatprep.subr.mxu0 %v577
    %615 = vmatpush1.msra.mxu0 %v576
    %616 = vmatprep.subr.mxu0 %v574
    %617 = vmatpush1.msra.mxu0 %v573
    %618 = vmatprep.subr.mxu0 %v571
    %619 = vmatpush1.msra.mxu0 %v570
    %620 = vmatprep.subr.mxu0 %v568
    %621 = vmatpush1.msra.mxu0 %v567
    %622 = vmatprep.subr.mxu0 %v565
    %623 = vmatpush1.msra.mxu0 %v564
    %624 = vmatprep.subr.mxu0 %v562
    %625 = vmatpush1.msra.mxu0 %v561
    %626 = vmatprep.subr.mxu0 %v559
    %627 = vmatpush1.msra.mxu0 %v558
    %628 = vmatprep.subr.mxu0 %v556
    %629 = vmatpush1.msra.mxu0 %v555
    %630 = vmatprep.subr.mxu0 %v553
    %631 = vmatpush1.msra.mxu0 %v552
    %632 = vmatprep.subr.mxu0 0.0
    %633 = vmatpush2.msra.mxu0 0.0
    %634 = vmatprep.subr.mxu0 0.0
    %635 = vmatpush2.msra.mxu0 0.0
    %636 = vmatprep.subr.mxu0 0.0
    %637 = vmatpush2.msra.mxu0 0.0
    %638 = vmatprep.subr.mxu0 0.0
    %639 = vmatpush2.msra.mxu0 0.0
    %640 = vmatprep.subr.mxu0 0.0
    %641 = vmatpush2.msra.mxu0 0.0
    %642 = vmatprep.subr.mxu0 0.0
    %643 = vmatpush2.msra.mxu0 0.0
    %644 = vmatprep.subr.mxu0 0.0
    %645 = vmatpush2.msra.mxu0 0.0
    %646 = vmatprep.subr.mxu0 0.0
    %647 = vmatpush2.msra.mxu0 0.0
    %648 = vmatprep.subr.mxu0 0.0
    %649 = vmatpush2.msra.mxu0 0.0
    %650 = vmatprep.subr.mxu0 0.0
    %651 = vmatpush2.msra.mxu0 0.0
    %652 = vmatprep.subr.mxu0 0.0
    %653 = vmatpush2.msra.mxu0 0.0
    %654 = vmatprep.subr.mxu0 0.0
    %655 = vmatpush2.msra.mxu0 0.0
    %656 = vmatprep.subr.mxu0 0.0
    %657 = vmatpush2.msra.mxu0 0.0
    %658 = vmatprep.subr.mxu0 0.0
    %659 = vmatpush2.msra.mxu0 0.0
    %660 = vmatprep.subr.mxu0 0.0
    %661 = vmatpush2.msra.mxu0 0.0
    %662 = vmatprep.subr.mxu0 0.0
    %663 = vmatpush2.msra.mxu0 0.0
    %664 = vmatprep.mubr.f32.mxu0 0.0
    %665 = vmatmul.mubr.f32.gmra.mxu0 %v548
    %v666 = vpop.f32.mrf.mxu0
    %v667 = vadd.f32 0.0, %v666
    %v668 = vpop.f32.mrf.mxu0
    %v669 = vadd.f32 0.0, %v668
    %670 = vdwg.mxu0
    %671 = vmatprep.subr.mxu0 0.0
    %672 = vmatpush1.msra.mxu0 %v599
    %673 = vmatprep.subr.mxu0 0.0
    %674 = vmatpush1.msra.mxu0 %v596
    %675 = vmatprep.subr.mxu0 0.0
    %676 = vmatpush1.msra.mxu0 %v593
    %677 = vmatprep.subr.mxu0 0.0
    %678 = vmatpush1.msra.mxu0 %v590
    %679 = vmatprep.subr.mxu0 0.0
    %680 = vmatpush1.msra.mxu0 %v587
    %681 = vmatprep.subr.mxu0 0.0
    %682 = vmatpush1.msra.mxu0 %v584
    %683 = vmatprep.subr.mxu0 0.0
    %684 = vmatpush1.msra.mxu0 %v581
    %685 = vmatprep.subr.mxu0 0.0
    %686 = vmatpush1.msra.mxu0 %v578
    %687 = vmatprep.subr.mxu0 0.0
    %688 = vmatpush1.msra.mxu0 %v575
    %689 = vmatprep.subr.mxu0 0.0
    %690 = vmatpush1.msra.mxu0 %v572
    %691 = vmatprep.subr.mxu0 0.0
    %692 = vmatpush1.msra.mxu0 %v569
    %693 = vmatprep.subr.mxu0 0.0
    %694 = vmatpush1.msra.mxu0 %v566
    %695 = vmatprep.subr.mxu0 0.0
    %696 = vmatpush1.msra.mxu0 %v563
    %697 = vmatprep.subr.mxu0 0.0
    %698 = vmatpush1.msra.mxu0 %v560
    %699 = vmatprep.subr.mxu0 0.0
    %700 = vmatpush1.msra.mxu0 %v557
    %701 = vmatprep.subr.mxu0 0.0
    %702 = vmatpush1.msra.mxu0 %v554
    %703 = vmatprep.subr.mxu0 0.0
    %704 = vmatpush2.msra.mxu0 0.0
    %705 = vmatprep.subr.mxu0 0.0
    %706 = vmatpush2.msra.mxu0 0.0
    %707 = vmatprep.subr.mxu0 0.0
    %708 = vmatpush2.msra.mxu0 0.0
    %709 = vmatprep.subr.mxu0 0.0
    %710 = vmatpush2.msra.mxu0 0.0
    %711 = vmatprep.subr.mxu0 0.0
    %712 = vmatpush2.msra.mxu0 0.0
    %713 = vmatprep.subr.mxu0 0.0
    %714 = vmatpush2.msra.mxu0 0.0
    %715 = vmatprep.subr.mxu0 0.0
    %716 = vmatpush2.msra.mxu0 0.0
    %717 = vmatprep.subr.mxu0 0.0
    %718 = vmatpush2.msra.mxu0 0.0
    %719 = vmatprep.subr.mxu0 0.0
    %720 = vmatpush2.msra.mxu0 0.0
    %721 = vmatprep.subr.mxu0 0.0
    %722 = vmatpush2.msra.mxu0 0.0
    %723 = vmatprep.subr.mxu0 0.0
    %724 = vmatpush2.msra.mxu0 0.0
    %725 = vmatprep.subr.mxu0 0.0
    %726 = vmatpush2.msra.mxu0 0.0
    %727 = vmatprep.subr.mxu0 0.0
    %728 = vmatpush2.msra.mxu0 0.0
    %729 = vmatprep.subr.mxu0 0.0
    %730 = vmatpush2.msra.mxu0 0.0
    %731 = vmatprep.subr.mxu0 0.0
    %732 = vmatpush2.msra.mxu0 0.0
    %733 = vmatprep.subr.mxu0 0.0
    %734 = vmatpush2.msra.mxu0 0.0
    %735 = vmatprep.mubr.f32.mxu0 0.0
    %736 = vmatmul.mubr.f32.gmra.mxu0 %v548
    %v737 = vpop.f32.mrf.mxu0
    %v738 = vadd.f32 0.0, %v737
    %v739 = vpop.f32.mrf.mxu0
    %740 = vdwg.mxu0
    %v741 = vadd.f32 %v551, %v667
    %v742 = vxor.u32 %v741, 2147483648
    %v743 = vmul.f32 %v742, 1.442695
    %v744 = vpow.pop %v743
    %v745 = vadd.f32 %v744, 1.0
    %v746 = vrcp.pop %v745
    %v747 = vmul.f32 1.0, %v746
    %v749 = vrot.slane %v551, 1
    %v751 = vadd.f32 %v749, %v669
    %v752 = vxor.u32 %v751, 2147483648
    %v753 = vmul.f32 %v752, 1.442695
    %v754 = vpow.pop %v753
    %v755 = vadd.f32 %v754, 1.0
    %v756 = vrcp.pop %v755
    %v757 = vmul.f32 1.0, %v756
    %v758 = vadd.f32 %v738, %v330
    %v759 = vmul.f32 %v747, %v758
    %v760 = vrot.slane %v551, 2
    %v762 = vadd.f32 %v760, %v759
    %v763 = vtanh.pop %v762
    %v764 = vsub.f32 1.0, %v757
    %v765 = vmul.f32 %v764, %v763
    %v766 = vmul.f32 %v757, %v548
    %v767 = vadd.f32 %v765, %v766
    %768 = vst [vmem:[#allocation9 + $0x1] sm:$0x1] %v767
    %s769 = scalar_lea.vmem [#allocation2], 2
    %v770 = vld [vmem:[%s769] ss:$8 sm:$0x7]
    %v771 = vld [vmem:[#allocation8] sm:$0xff]
    %v772 = vld [vmem:[#allocation8 + $0x8] sm:$0xff]
    %v773 = vld [vmem:[#allocation8 + $0x10] sm:$0xff]
    %v774 = vld [vmem:[#allocation8 + $0x18] sm:$0xff]
    %v775 = vld [vmem:[#allocation8 + $0x20] sm:$0xff]
    %v776 = vld [vmem:[#allocation8 + $0x28] sm:$0xff]
    %v777 = vld [vmem:[#allocation8 + $0x30] sm:$0xff]
    %v778 = vld [vmem:[#allocation8 + $0x38] sm:$0xff]
    %v779 = vld [vmem:[#allocation8 + $0x40] sm:$0xff]
    %v780 = vld [vmem:[#allocation8 + $0x48] sm:$0xff]
    %v781 = vld [vmem:[#allocation8 + $0x50] sm:$0xff]
    %v782 = vld [vmem:[#allocation8 + $0x58] sm:$0xff]
    %v783 = vld [vmem:[#allocation8 + $0x60] sm:$0xff]
    %v784 = vld [vmem:[#allocation8 + $0x68] sm:$0xff]
    %v785 = vld [vmem:[#allocation8 + $0x70] sm:$0xff]
    %v786 = vld [vmem:[#allocation8 + $0x78] sm:$0xff]
    %v787 = vld [vmem:[#allocation8 + $0x80] sm:$0xff]
    %v788 = vld [vmem:[#allocation8 + $0x88] sm:$0xff]
    %v789 = vld [vmem:[#allocation8 + $0x90] sm:$0xff]
    %v790 = vld [vmem:[#allocation8 + $0x98] sm:$0xff]
    %v791 = vld [vmem:[#allocation8 + $0xa0] sm:$0xff]
    %v792 = vld [vmem:[#allocation8 + $0xa8] sm:$0xff]
    %v793 = vld [vmem:[#allocation8 + $0xb0] sm:$0xff]
    %v794 = vld [vmem:[#allocation8 + $0xb8] sm:$0xff]
    %v795 = vld [vmem:[#allocation8 + $0xc0] sm:$0xff]
    %v796 = vld [vmem:[#allocation8 + $0xc8] sm:$0xff]
    %v797 = vld [vmem:[#allocation8 + $0xd0] sm:$0xff]
    %v798 = vld [vmem:[#allocation8 + $0xd8] sm:$0xff]
    %v799 = vld [vmem:[#allocation8 + $0xe0] sm:$0xff]
    %v800 = vld [vmem:[#allocation8 + $0xe8] sm:$0xff]
    %v801 = vld [vmem:[#allocation8 + $0xf0] sm:$0xff]
    %v802 = vld [vmem:[#allocation8 + $0xf8] sm:$0xff]
    %v803 = vld [vmem:[#allocation8 + $0x100] sm:$0xff]
    %v804 = vld [vmem:[#allocation8 + $0x108] sm:$0xff]
    %v805 = vld [vmem:[#allocation8 + $0x110] sm:$0xff]
    %v806 = vld [vmem:[#allocation8 + $0x118] sm:$0xff]
    %v807 = vld [vmem:[#allocation8 + $0x120] sm:$0xff]
    %v808 = vld [vmem:[#allocation8 + $0x128] sm:$0xff]
    %v809 = vld [vmem:[#allocation8 + $0x130] sm:$0xff]
    %v810 = vld [vmem:[#allocation8 + $0x138] sm:$0xff]
    %v811 = vld [vmem:[#allocation8 + $0x140] sm:$0xff]
    %v812 = vld [vmem:[#allocation8 + $0x148] sm:$0xff]
    %v813 = vld [vmem:[#allocation8 + $0x150] sm:$0xff]
    %v814 = vld [vmem:[#allocation8 + $0x158] sm:$0xff]
    %v815 = vld [vmem:[#allocation8 + $0x160] sm:$0xff]
    %v816 = vld [vmem:[#allocation8 + $0x168] sm:$0xff]
    %v817 = vld [vmem:[#allocation8 + $0x170] sm:$0xff]
    %v818 = vld [vmem:[#allocation8 + $0x178] sm:$0xff]
    %819 = vmatprep.subr.mxu0 %v817
    %820 = vmatpush1.msra.mxu0 %v816
    %821 = vmatprep.subr.mxu0 %v814
    %822 = vmatpush1.msra.mxu0 %v813
    %823 = vmatprep.subr.mxu0 %v811
    %824 = vmatpush1.msra.mxu0 %v810
    %825 = vmatprep.subr.mxu0 %v808
    %826 = vmatpush1.msra.mxu0 %v807
    %827 = vmatprep.subr.mxu0 %v805
    %828 = vmatpush1.msra.mxu0 %v804
    %829 = vmatprep.subr.mxu0 %v802
    %830 = vmatpush1.msra.mxu0 %v801
    %831 = vmatprep.subr.mxu0 %v799
    %832 = vmatpush1.msra.mxu0 %v798
    %833 = vmatprep.subr.mxu0 %v796
    %834 = vmatpush1.msra.mxu0 %v795
    %835 = vmatprep.subr.mxu0 %v793
    %836 = vmatpush1.msra.mxu0 %v792
    %837 = vmatprep.subr.mxu0 %v790
    %838 = vmatpush1.msra.mxu0 %v789
    %839 = vmatprep.subr.mxu0 %v787
    %840 = vmatpush1.msra.mxu0 %v786
    %841 = vmatprep.subr.mxu0 %v784
    %842 = vmatpush1.msra.mxu0 %v783
    %843 = vmatprep.subr.mxu0 %v781
    %844 = vmatpush1.msra.mxu0 %v780
    %845 = vmatprep.subr.mxu0 %v778
    %846 = vmatpush1.msra.mxu0 %v777
    %847 = vmatprep.subr.mxu0 %v775
    %848 = vmatpush1.msra.mxu0 %v774
    %849 = vmatprep.subr.mxu0 %v772
    %850 = vmatpush1.msra.mxu0 %v771
    %851 = vmatprep.subr.mxu0 0.0
    %852 = vmatpush2.msra.mxu0 0.0
    %853 = vmatprep.subr.mxu0 0.0
    %854 = vmatpush2.msra.mxu0 0.0
    %855 = vmatprep.subr.mxu0 0.0
    %856 = vmatpush2.msra.mxu0 0.0
    %857 = vmatprep.subr.mxu0 0.0
    %858 = vmatpush2.msra.mxu0 0.0
    %859 = vmatprep.subr.mxu0 0.0
    %860 = vmatpush2.msra.mxu0 0.0
    %861 = vmatprep.subr.mxu0 0.0
    %862 = vmatpush2.msra.mxu0 0.0
    %863 = vmatprep.subr.mxu0 0.0
    %864 = vmatpush2.msra.mxu0 0.0
    %865 = vmatprep.subr.mxu0 0.0
    %866 = vmatpush2.msra.mxu0 0.0
    %867 = vmatprep.subr.mxu0 0.0
    %868 = vmatpush2.msra.mxu0 0.0
    %869 = vmatprep.subr.mxu0 0.0
    %870 = vmatpush2.msra.mxu0 0.0
    %871 = vmatprep.subr.mxu0 0.0
    %872 = vmatpush2.msra.mxu0 0.0
    %873 = vmatprep.subr.mxu0 0.0
    %874 = vmatpush2.msra.mxu0 0.0
    %875 = vmatprep.subr.mxu0 0.0
    %876 = vmatpush2.msra.mxu0 0.0
    %877 = vmatprep.subr.mxu0 0.0
    %878 = vmatpush2.msra.mxu0 0.0
    %879 = vmatprep.subr.mxu0 0.0
    %880 = vmatpush2.msra.mxu0 0.0
    %881 = vmatprep.subr.mxu0 0.0
    %882 = vmatpush2.msra.mxu0 0.0
    %883 = vmatprep.mubr.f32.mxu0 0.0
    %884 = vmatmul.mubr.f32.gmra.mxu0 %v767
    %v885 = vpop.f32.mrf.mxu0
    %v886 = vadd.f32 0.0, %v885
    %v887 = vpop.f32.mrf.mxu0
    %v888 = vadd.f32 0.0, %v887
    %889 = vdwg.mxu0
    %890 = vmatprep.subr.mxu0 0.0
    %891 = vmatpush1.msra.mxu0 %v818
    %892 = vmatprep.subr.mxu0 0.0
    %893 = vmatpush1.msra.mxu0 %v815
    %894 = vmatprep.subr.mxu0 0.0
    %895 = vmatpush1.msra.mxu0 %v812
    %896 = vmatprep.subr.mxu0 0.0
    %897 = vmatpush1.msra.mxu0 %v809
    %898 = vmatprep.subr.mxu0 0.0
    %899 = vmatpush1.msra.mxu0 %v806
    %900 = vmatprep.subr.mxu0 0.0
    %901 = vmatpush1.msra.mxu0 %v803
    %902 = vmatprep.subr.mxu0 0.0
    %903 = vmatpush1.msra.mxu0 %v800
    %904 = vmatprep.subr.mxu0 0.0
    %905 = vmatpush1.msra.mxu0 %v797
    %906 = vmatprep.subr.mxu0 0.0
    %907 = vmatpush1.msra.mxu0 %v794
    %908 = vmatprep.subr.mxu0 0.0
    %909 = vmatpush1.msra.mxu0 %v791
    %910 = vmatprep.subr.mxu0 0.0
    %911 = vmatpush1.msra.mxu0 %v788
    %912 = vmatprep.subr.mxu0 0.0
    %913 = vmatpush1.msra.mxu0 %v785
    %914 = vmatprep.subr.mxu0 0.0
    %915 = vmatpush1.msra.mxu0 %v782
    %916 = vmatprep.subr.mxu0 0.0
    %917 = vmatpush1.msra.mxu0 %v779
    %918 = vmatprep.subr.mxu0 0.0
    %919 = vmatpush1.msra.mxu0 %v776
    %920 = vmatprep.subr.mxu0 0.0
    %921 = vmatpush1.msra.mxu0 %v773
    %922 = vmatprep.subr.mxu0 0.0
    %923 = vmatpush2.msra.mxu0 0.0
    %924 = vmatprep.subr.mxu0 0.0
    %925 = vmatpush2.msra.mxu0 0.0
    %926 = vmatprep.subr.mxu0 0.0
    %927 = vmatpush2.msra.mxu0 0.0
    %928 = vmatprep.subr.mxu0 0.0
    %929 = vmatpush2.msra.mxu0 0.0
    %930 = vmatprep.subr.mxu0 0.0
    %931 = vmatpush2.msra.mxu0 0.0
    %932 = vmatprep.subr.mxu0 0.0
    %933 = vmatpush2.msra.mxu0 0.0
    %934 = vmatprep.subr.mxu0 0.0
    %935 = vmatpush2.msra.mxu0 0.0
    %936 = vmatprep.subr.mxu0 0.0
    %937 = vmatpush2.msra.mxu0 0.0
    %938 = vmatprep.subr.mxu0 0.0
    %939 = vmatpush2.msra.mxu0 0.0
    %940 = vmatprep.subr.mxu0 0.0
    %941 = vmatpush2.msra.mxu0 0.0
    %942 = vmatprep.subr.mxu0 0.0
    %943 = vmatpush2.msra.mxu0 0.0
    %944 = vmatprep.subr.mxu0 0.0
    %945 = vmatpush2.msra.mxu0 0.0
    %946 = vmatprep.subr.mxu0 0.0
    %947 = vmatpush2.msra.mxu0 0.0
    %948 = vmatprep.subr.mxu0 0.0
    %949 = vmatpush2.msra.mxu0 0.0
    %950 = vmatprep.subr.mxu0 0.0
    %951 = vmatpush2.msra.mxu0 0.0
    %952 = vmatprep.subr.mxu0 0.0
    %953 = vmatpush2.msra.mxu0 0.0
    %954 = vmatprep.mubr.f32.mxu0 0.0
    %955 = vmatmul.mubr.f32.gmra.mxu0 %v767
    %v956 = vpop.f32.mrf.mxu0
    %v957 = vadd.f32 0.0, %v956
    %v958 = vpop.f32.mrf.mxu0
    %959 = vdwg.mxu0
    %v960 = vadd.f32 %v770, %v886
    %v961 = vxor.u32 %v960, 2147483648
    %v962 = vmul.f32 %v961, 1.442695
    %v963 = vpow.pop %v962
    %v964 = vadd.f32 %v963, 1.0
    %v965 = vrcp.pop %v964
    %v966 = vmul.f32 1.0, %v965
    %v968 = vrot.slane %v770, 1
    %v970 = vadd.f32 %v968, %v888
    %v971 = vxor.u32 %v970, 2147483648
    %v972 = vmul.f32 %v971, 1.442695
    %v973 = vpow.pop %v972
    %v974 = vadd.f32 %v973, 1.0
    %v975 = vrcp.pop %v974
    %v976 = vmul.f32 1.0, %v975
    %v977 = vadd.f32 %v957, %v330
    %v978 = vmul.f32 %v966, %v977
    %v979 = vrot.slane %v770, 2
    %v981 = vadd.f32 %v979, %v978
    %v982 = vtanh.pop %v981
    %v983 = vsub.f32 1.0, %v976
    %v984 = vmul.f32 %v983, %v982
    %v985 = vmul.f32 %v976, %v767
    %v986 = vadd.f32 %v984, %v985
    %987 = vst [vmem:[#allocation9 + $0x2] sm:$0x1] %v986
    %s988 = scalar_lea.vmem [#allocation2], 3
    %v989 = vld [vmem:[%s988] ss:$8 sm:$0x7]
    %v990 = vld [vmem:[#allocation8] sm:$0xff]
    %v991 = vld [vmem:[#allocation8 + $0x8] sm:$0xff]
    %v992 = vld [vmem:[#allocation8 + $0x10] sm:$0xff]
    %v993 = vld [vmem:[#allocation8 + $0x18] sm:$0xff]
    %v994 = vld [vmem:[#allocation8 + $0x20] sm:$0xff]
    %v995 = vld [vmem:[#allocation8 + $0x28] sm:$0xff]
    %v996 = vld [vmem:[#allocation8 + $0x30] sm:$0xff]
    %v997 = vld [vmem:[#allocation8 + $0x38] sm:$0xff]
    %v998 = vld [vmem:[#allocation8 + $0x40] sm:$0xff]
    %v999 = vld [vmem:[#allocation8 + $0x48] sm:$0xff]
    %v1000 = vld [vmem:[#allocation8 + $0x50] sm:$0xff]
    %v1001 = vld [vmem:[#allocation8 + $0x58] sm:$0xff]
    %v1002 = vld [vmem:[#allocation8 + $0x60] sm:$0xff]
    %v1003 = vld [vmem:[#allocation8 + $0x68] sm:$0xff]
    %v1004 = vld [vmem:[#allocation8 + $0x70] sm:$0xff]
    %v1005 = vld [vmem:[#allocation8 + $0x78] sm:$0xff]
    %v1006 = vld [vmem:[#allocation8 + $0x80] sm:$0xff]
    %v1007 = vld [vmem:[#allocation8 + $0x88] sm:$0xff]
    %v1008 = vld [vmem:[#allocation8 + $0x90] sm:$0xff]
    %v1009 = vld [vmem:[#allocation8 + $0x98] sm:$0xff]
    %v1010 = vld [vmem:[#allocation8 + $0xa0] sm:$0xff]
    %v1011 = vld [vmem:[#allocation8 + $0xa8] sm:$0xff]
    %v1012 = vld [vmem:[#allocation8 + $0xb0] sm:$0xff]
    %v1013 = vld [vmem:[#allocation8 + $0xb8] sm:$0xff]
    %v1014 = vld [vmem:[#allocation8 + $0xc0] sm:$0xff]
    %v1015 = vld [vmem:[#allocation8 + $0xc8] sm:$0xff]
    %v1016 = vld [vmem:[#allocation8 + $0xd0] sm:$0xff]
    %v1017 = vld [vmem:[#allocation8 + $0xd8] sm:$0xff]
    %v1018 = vld [vmem:[#allocation8 + $0xe0] sm:$0xff]
    %v1019 = vld [vmem:[#allocation8 + $0xe8] sm:$0xff]
    %v1020 = vld [vmem:[#allocation8 + $0xf0] sm:$0xff]
    %v1021 = vld [vmem:[#allocation8 + $0xf8] sm:$0xff]
    %v1022 = vld [vmem:[#allocation8 + $0x100] sm:$0xff]
    %v1023 = vld [vmem:[#allocation8 + $0x108] sm:$0xff]
    %v1024 = vld [vmem:[#allocation8 + $0x110] sm:$0xff]
    %v1025 = vld [vmem:[#allocation8 + $0x118] sm:$0xff]
    %v1026 = vld [vmem:[#allocation8 + $0x120] sm:$0xff]
    %v1027 = vld [vmem:[#allocation8 + $0x128] sm:$0xff]
    %v1028 = vld [vmem:[#allocation8 + $0x130] sm:$0xff]
    %v1029 = vld [vmem:[#allocation8 + $0x138] sm:$0xff]
    %v1030 = vld [vmem:[#allocation8 + $0x140] sm:$0xff]
    %v1031 = vld [vmem:[#allocation8 + $0x148] sm:$0xff]
    %v1032 = vld [vmem:[#allocation8 + $0x150] sm:$0xff]
    %v1033 = vld [vmem:[#allocation8 + $0x158] sm:$0xff]
    %v1034 = vld [vmem:[#allocation8 + $0x160] sm:$0xff]
    %v1035 = vld [vmem:[#allocation8 + $0x168] sm:$0xff]
    %v1036 = vld [vmem:[#allocation8 + $0x170] sm:$0xff]
    %v1037 = vld [vmem:[#allocation8 + $0x178] sm:$0xff]
    %1038 = vmatprep.subr.mxu0 %v1036
    %1039 = vmatpush1.msra.mxu0 %v1035
    %1040 = vmatprep.subr.mxu0 %v1033
    %1041 = vmatpush1.msra.mxu0 %v1032
    %1042 = vmatprep.subr.mxu0 %v1030
    %1043 = vmatpush1.msra.mxu0 %v1029
    %1044 = vmatprep.subr.mxu0 %v1027
    %1045 = vmatpush1.msra.mxu0 %v1026
    %1046 = vmatprep.subr.mxu0 %v1024
    %1047 = vmatpush1.msra.mxu0 %v1023
    %1048 = vmatprep.subr.mxu0 %v1021
    %1049 = vmatpush1.msra.mxu0 %v1020
    %1050 = vmatprep.subr.mxu0 %v1018
    %1051 = vmatpush1.msra.mxu0 %v1017
    %1052 = vmatprep.subr.mxu0 %v1015
    %1053 = vmatpush1.msra.mxu0 %v1014
    %1054 = vmatprep.subr.mxu0 %v1012
    %1055 = vmatpush1.msra.mxu0 %v1011
    %1056 = vmatprep.subr.mxu0 %v1009
    %1057 = vmatpush1.msra.mxu0 %v1008
    %1058 = vmatprep.subr.mxu0 %v1006
    %1059 = vmatpush1.msra.mxu0 %v1005
    %1060 = vmatprep.subr.mxu0 %v1003
    %1061 = vmatpush1.msra.mxu0 %v1002
    %1062 = vmatprep.subr.mxu0 %v1000
    %1063 = vmatpush1.msra.mxu0 %v999
    %1064 = vmatprep.subr.mxu0 %v997
    %1065 = vmatpush1.msra.mxu0 %v996
    %1066 = vmatprep.subr.mxu0 %v994
    %1067 = vmatpush1.msra.mxu0 %v993
    %1068 = vmatprep.subr.mxu0 %v991
    %1069 = vmatpush1.msra.mxu0 %v990
    %1070 = vmatprep.subr.mxu0 0.0
    %1071 = vmatpush2.msra.mxu0 0.0
    %1072 = vmatprep.subr.mxu0 0.0
    %1073 = vmatpush2.msra.mxu0 0.0
    %1074 = vmatprep.subr.mxu0 0.0
    %1075 = vmatpush2.msra.mxu0 0.0
    %1076 = vmatprep.subr.mxu0 0.0
    %1077 = vmatpush2.msra.mxu0 0.0
    %1078 = vmatprep.subr.mxu0 0.0
    %1079 = vmatpush2.msra.mxu0 0.0
    %1080 = vmatprep.subr.mxu0 0.0
    %1081 = vmatpush2.msra.mxu0 0.0
    %1082 = vmatprep.subr.mxu0 0.0
    %1083 = vmatpush2.msra.mxu0 0.0
    %1084 = vmatprep.subr.mxu0 0.0
    %1085 = vmatpush2.msra.mxu0 0.0
    %1086 = vmatprep.subr.mxu0 0.0
    %1087 = vmatpush2.msra.mxu0 0.0
    %1088 = vmatprep.subr.mxu0 0.0
    %1089 = vmatpush2.msra.mxu0 0.0
    %1090 = vmatprep.subr.mxu0 0.0
    %1091 = vmatpush2.msra.mxu0 0.0
    %1092 = vmatprep.subr.mxu0 0.0
    %1093 = vmatpush2.msra.mxu0 0.0
    %1094 = vmatprep.subr.mxu0 0.0
    %1095 = vmatpush2.msra.mxu0 0.0
    %1096 = vmatprep.subr.mxu0 0.0
    %1097 = vmatpush2.msra.mxu0 0.0
    %1098 = vmatprep.subr.mxu0 0.0
    %1099 = vmatpush2.msra.mxu0 0.0
    %1100 = vmatprep.subr.mxu0 0.0
    %1101 = vmatpush2.msra.mxu0 0.0
    %1102 = vmatprep.mubr.f32.mxu0 0.0
    %1103 = vmatmul.mubr.f32.gmra.mxu0 %v986
    %v1104 = vpop.f32.mrf.mxu0
    %v1105 = vadd.f32 0.0, %v1104
    %v1106 = vpop.f32.mrf.mxu0
    %v1107 = vadd.f32 0.0, %v1106
    %1108 = vdwg.mxu0
    %1109 = vmatprep.subr.mxu0 0.0
    %1110 = vmatpush1.msra.mxu0 %v1037
    %1111 = vmatprep.subr.mxu0 0.0
    %1112 = vmatpush1.msra.mxu0 %v1034
    %1113 = vmatprep.subr.mxu0 0.0
    %1114 = vmatpush1.msra.mxu0 %v1031
    %1115 = vmatprep.subr.mxu0 0.0
    %1116 = vmatpush1.msra.mxu0 %v1028
    %1117 = vmatprep.subr.mxu0 0.0
    %1118 = vmatpush1.msra.mxu0 %v1025
    %1119 = vmatprep.subr.mxu0 0.0
    %1120 = vmatpush1.msra.mxu0 %v1022
    %1121 = vmatprep.subr.mxu0 0.0
    %1122 = vmatpush1.msra.mxu0 %v1019
    %1123 = vmatprep.subr.mxu0 0.0
    %1124 = vmatpush1.msra.mxu0 %v1016
    %1125 = vmatprep.subr.mxu0 0.0
    %1126 = vmatpush1.msra.mxu0 %v1013
    %1127 = vmatprep.subr.mxu0 0.0
    %1128 = vmatpush1.msra.mxu0 %v1010
    %1129 = vmatprep.subr.mxu0 0.0
    %1130 = vmatpush1.msra.mxu0 %v1007
    %1131 = vmatprep.subr.mxu0 0.0
    %1132 = vmatpush1.msra.mxu0 %v1004
    %1133 = vmatprep.subr.mxu0 0.0
    %1134 = vmatpush1.msra.mxu0 %v1001
    %1135 = vmatprep.subr.mxu0 0.0
    %1136 = vmatpush1.msra.mxu0 %v998
    %1137 = vmatprep.subr.mxu0 0.0
    %1138 = vmatpush1.msra.mxu0 %v995
    %1139 = vmatprep.subr.mxu0 0.0
    %1140 = vmatpush1.msra.mxu0 %v992
    %1141 = vmatprep.subr.mxu0 0.0
    %1142 = vmatpush2.msra.mxu0 0.0
    %1143 = vmatprep.subr.mxu0 0.0
    %1144 = vmatpush2.msra.mxu0 0.0
    %1145 = vmatprep.subr.mxu0 0.0
    %1146 = vmatpush2.msra.mxu0 0.0
    %1147 = vmatprep.subr.mxu0 0.0
    %1148 = vmatpush2.msra.mxu0 0.0
    %1149 = vmatprep.subr.mxu0 0.0
    %1150 = vmatpush2.msra.mxu0 0.0
    %1151 = vmatprep.subr.mxu0 0.0
    %1152 = vmatpush2.msra.mxu0 0.0
    %1153 = vmatprep.subr.mxu0 0.0
    %1154 = vmatpush2.msra.mxu0 0.0
    %1155 = vmatprep.subr.mxu0 0.0
    %1156 = vmatpush2.msra.mxu0 0.0
    %1157 = vmatprep.subr.mxu0 0.0
    %1158 = vmatpush2.msra.mxu0 0.0
    %1159 = vmatprep.subr.mxu0 0.0
    %1160 = vmatpush2.msra.mxu0 0.0
    %1161 = vmatprep.subr.mxu0 0.0
    %1162 = vmatpush2.msra.mxu0 0.0
    %1163 = vmatprep.subr.mxu0 0.0
    %1164 = vmatpush2.msra.mxu0 0.0
    %1165 = vmatprep.subr.mxu0 0.0
    %1166 = vmatpush2.msra.mxu0 0.0
    %1167 = vmatprep.subr.mxu0 0.0
    %1168 = vmatpush2.msra.mxu0 0.0
    %1169 = vmatprep.subr.mxu0 0.0
    %1170 = vmatpush2.msra.mxu0 0.0
    %1171 = vmatprep.subr.mxu0 0.0
    %1172 = vmatpush2.msra.mxu0 0.0
    %1173 = vmatprep.mubr.f32.mxu0 0.0
    %1174 = vmatmul.mubr.f32.gmra.mxu0 %v986
    %v1175 = vpop.f32.mrf.mxu0
    %v1176 = vadd.f32 0.0, %v1175
    %v1177 = vpop.f32.mrf.mxu0
    %1178 = vdwg.mxu0
    %v1179 = vadd.f32 %v989, %v1105
    %v1180 = vxor.u32 %v1179, 2147483648
    %v1181 = vmul.f32 %v1180, 1.442695
    %v1182 = vpow.pop %v1181
    %v1183 = vadd.f32 %v1182, 1.0
    %v1184 = vrcp.pop %v1183
    %v1185 = vmul.f32 1.0, %v1184
    %v1187 = vrot.slane %v989, 1
    %v1189 = vadd.f32 %v1187, %v1107
    %v1190 = vxor.u32 %v1189, 2147483648
    %v1191 = vmul.f32 %v1190, 1.442695
    %v1192 = vpow.pop %v1191
    %v1193 = vadd.f32 %v1192, 1.0
    %v1194 = vrcp.pop %v1193
    %v1195 = vmul.f32 1.0, %v1194
    %v1196 = vadd.f32 %v1176, %v330
    %v1197 = vmul.f32 %v1185, %v1196
    %v1198 = vrot.slane %v989, 2
    %v1200 = vadd.f32 %v1198, %v1197
    %v1201 = vtanh.pop %v1200
    %v1202 = vsub.f32 1.0, %v1195
    %v1203 = vmul.f32 %v1202, %v1201
    %v1204 = vmul.f32 %v1195, %v986
    %v1205 = vadd.f32 %v1203, %v1204
    %1206 = vst [vmem:[#allocation9 + $0x3] sm:$0x1] %v1205
    %s1207 = scalar_lea.vmem [#allocation2], 4
    %v1208 = vld [vmem:[%s1207] ss:$8 sm:$0x7]
    %v1209 = vld [vmem:[#allocation8] sm:$0xff]
    %v1210 = vld [vmem:[#allocation8 + $0x8] sm:$0xff]
    %v1211 = vld [vmem:[#allocation8 + $0x10] sm:$0xff]
    %v1212 = vld [vmem:[#allocation8 + $0x18] sm:$0xff]
    %v1213 = vld [vmem:[#allocation8 + $0x20] sm:$0xff]
    %v1214 = vld [vmem:[#allocation8 + $0x28] sm:$0xff]
    %v1215 = vld [vmem:[#allocation8 + $0x30] sm:$0xff]
    %v1216 = vld [vmem:[#allocation8 + $0x38] sm:$0xff]
    %v1217 = vld [vmem:[#allocation8 + $0x40] sm:$0xff]
    %v1218 = vld [vmem:[#allocation8 + $0x48] sm:$0xff]
    %v1219 = vld [vmem:[#allocation8 + $0x50] sm:$0xff]
    %v1220 = vld [vmem:[#allocation8 + $0x58] sm:$0xff]
    %v1221 = vld [vmem:[#allocation8 + $0x60] sm:$0xff]
    %v1222 = vld [vmem:[#allocation8 + $0x68] sm:$0xff]
    %v1223 = vld [vmem:[#allocation8 + $0x70] sm:$0xff]
    %v1224 = vld [vmem:[#allocation8 + $0x78] sm:$0xff]
    %v1225 = vld [vmem:[#allocation8 + $0x80] sm:$0xff]
    %v1226 = vld [vmem:[#allocation8 + $0x88] sm:$0xff]
    %v1227 = vld [vmem:[#allocation8 + $0x90] sm:$0xff]
    %v1228 = vld [vmem:[#allocation8 + $0x98] sm:$0xff]
    %v1229 = vld [vmem:[#allocation8 + $0xa0] sm:$0xff]
    %v1230 = vld [vmem:[#allocation8 + $0xa8] sm:$0xff]
    %v1231 = vld [vmem:[#allocation8 + $0xb0] sm:$0xff]
    %v1232 = vld [vmem:[#allocation8 + $0xb8] sm:$0xff]
    %v1233 = vld [vmem:[#allocation8 + $0xc0] sm:$0xff]
    %v1234 = vld [vmem:[#allocation8 + $0xc8] sm:$0xff]
    %v1235 = vld [vmem:[#allocation8 + $0xd0] sm:$0xff]
    %v1236 = vld [vmem:[#allocation8 + $0xd8] sm:$0xff]
    %v1237 = vld [vmem:[#allocation8 + $0xe0] sm:$0xff]
    %v1238 = vld [vmem:[#allocation8 + $0xe8] sm:$0xff]
    %v1239 = vld [vmem:[#allocation8 + $0xf0] sm:$0xff]
    %v1240 = vld [vmem:[#allocation8 + $0xf8] sm:$0xff]
    %v1241 = vld [vmem:[#allocation8 + $0x100] sm:$0xff]
    %v1242 = vld [vmem:[#allocation8 + $0x108] sm:$0xff]
    %v1243 = vld [vmem:[#allocation8 + $0x110] sm:$0xff]
    %v1244 = vld [vmem:[#allocation8 + $0x118] sm:$0xff]
    %v1245 = vld [vmem:[#allocation8 + $0x120] sm:$0xff]
    %v1246 = vld [vmem:[#allocation8 + $0x128] sm:$0xff]
    %v1247 = vld [vmem:[#allocation8 + $0x130] sm:$0xff]
    %v1248 = vld [vmem:[#allocation8 + $0x138] sm:$0xff]
    %v1249 = vld [vmem:[#allocation8 + $0x140] sm:$0xff]
    %v1250 = vld [vmem:[#allocation8 + $0x148] sm:$0xff]
    %v1251 = vld [vmem:[#allocation8 + $0x150] sm:$0xff]
    %v1252 = vld [vmem:[#allocation8 + $0x158] sm:$0xff]
    %v1253 = vld [vmem:[#allocation8 + $0x160] sm:$0xff]
    %v1254 = vld [vmem:[#allocation8 + $0x168] sm:$0xff]
    %v1255 = vld [vmem:[#allocation8 + $0x170] sm:$0xff]
    %v1256 = vld [vmem:[#allocation8 + $0x178] sm:$0xff]
    %1257 = vmatprep.subr.mxu0 %v1255
    %1258 = vmatpush1.msra.mxu0 %v1254
    %1259 = vmatprep.subr.mxu0 %v1252
    %1260 = vmatpush1.msra.mxu0 %v1251
    %1261 = vmatprep.subr.mxu0 %v1249
    %1262 = vmatpush1.msra.mxu0 %v1248
    %1263 = vmatprep.subr.mxu0 %v1246
    %1264 = vmatpush1.msra.mxu0 %v1245
    %1265 = vmatprep.subr.mxu0 %v1243
    %1266 = vmatpush1.msra.mxu0 %v1242
    %1267 = vmatprep.subr.mxu0 %v1240
    %1268 = vmatpush1.msra.mxu0 %v1239
    %1269 = vmatprep.subr.mxu0 %v1237
    %1270 = vmatpush1.msra.mxu0 %v1236
    %1271 = vmatprep.subr.mxu0 %v1234
    %1272 = vmatpush1.msra.mxu0 %v1233
    %1273 = vmatprep.subr.mxu0 %v1231
    %1274 = vmatpush1.msra.mxu0 %v1230
    %1275 = vmatprep.subr.mxu0 %v1228
    %1276 = vmatpush1.msra.mxu0 %v1227
    %1277 = vmatprep.subr.mxu0 %v1225
    %1278 = vmatpush1.msra.mxu0 %v1224
    %1279 = vmatprep.subr.mxu0 %v1222
    %1280 = vmatpush1.msra.mxu0 %v1221
    %1281 = vmatprep.subr.mxu0 %v1219
    %1282 = vmatpush1.msra.mxu0 %v1218
    %1283 = vmatprep.subr.mxu0 %v1216
    %1284 = vmatpush1.msra.mxu0 %v1215
    %1285 = vmatprep.subr.mxu0 %v1213
    %1286 = vmatpush1.msra.mxu0 %v1212
    %1287 = vmatprep.subr.mxu0 %v1210
    %1288 = vmatpush1.msra.mxu0 %v1209
    %1289 = vmatprep.subr.mxu0 0.0
    %1290 = vmatpush2.msra.mxu0 0.0
    %1291 = vmatprep.subr.mxu0 0.0
    %1292 = vmatpush2.msra.mxu0 0.0
    %1293 = vmatprep.subr.mxu0 0.0
    %1294 = vmatpush2.msra.mxu0 0.0
    %1295 = vmatprep.subr.mxu0 0.0
    %1296 = vmatpush2.msra.mxu0 0.0
    %1297 = vmatprep.subr.mxu0 0.0
    %1298 = vmatpush2.msra.mxu0 0.0
    %1299 = vmatprep.subr.mxu0 0.0
    %1300 = vmatpush2.msra.mxu0 0.0
    %1301 = vmatprep.subr.mxu0 0.0
    %1302 = vmatpush2.msra.mxu0 0.0
    %1303 = vmatprep.subr.mxu0 0.0
    %1304 = vmatpush2.msra.mxu0 0.0
    %1305 = vmatprep.subr.mxu0 0.0
    %1306 = vmatpush2.msra.mxu0 0.0
    %1307 = vmatprep.subr.mxu0 0.0
    %1308 = vmatpush2.msra.mxu0 0.0
    %1309 = vmatprep.subr.mxu0 0.0
    %1310 = vmatpush2.msra.mxu0 0.0
    %1311 = vmatprep.subr.mxu0 0.0
    %1312 = vmatpush2.msra.mxu0 0.0
    %1313 = vmatprep.subr.mxu0 0.0
    %1314 = vmatpush2.msra.mxu0 0.0
    %1315 = vmatprep.subr.mxu0 0.0
    %1316 = vmatpush2.msra.mxu0 0.0
    %1317 = vmatprep.subr.mxu0 0.0
    %1318 = vmatpush2.msra.mxu0 0.0
    %1319 = vmatprep.subr.mxu0 0.0
    %1320 = vmatpush2.msra.mxu0 0.0
    %1321 = vmatprep.mubr.f32.mxu0 0.0
    %1322 = vmatmul.mubr.f32.gmra.mxu0 %v1205
    %v1323 = vpop.f32.mrf.mxu0
    %v1324 = vadd.f32 0.0, %v1323
    %v1325 = vpop.f32.mrf.mxu0
    %v1326 = vadd.f32 0.0, %v1325
    %1327 = vdwg.mxu0
    %1328 = vmatprep.subr.mxu0 0.0
    %1329 = vmatpush1.msra.mxu0 %v1256
    %1330 = vmatprep.subr.mxu0 0.0
    %1331 = vmatpush1.msra.mxu0 %v1253
    %1332 = vmatprep.subr.mxu0 0.0
    %1333 = vmatpush1.msra.mxu0 %v1250
    %1334 = vmatprep.subr.mxu0 0.0
    %1335 = vmatpush1.msra.mxu0 %v1247
    %1336 = vmatprep.subr.mxu0 0.0
    %1337 = vmatpush1.msra.mxu0 %v1244
    %1338 = vmatprep.subr.mxu0 0.0
    %1339 = vmatpush1.msra.mxu0 %v1241
    %1340 = vmatprep.subr.mxu0 0.0
    %1341 = vmatpush1.msra.mxu0 %v1238
    %1342 = vmatprep.subr.mxu0 0.0
    %1343 = vmatpush1.msra.mxu0 %v1235
    %1344 = vmatprep.subr.mxu0 0.0
    %1345 = vmatpush1.msra.mxu0 %v1232
    %1346 = vmatprep.subr.mxu0 0.0
    %1347 = vmatpush1.msra.mxu0 %v1229
    %1348 = vmatprep.subr.mxu0 0.0
    %1349 = vmatpush1.msra.mxu0 %v1226
    %1350 = vmatprep.subr.mxu0 0.0
    %1351 = vmatpush1.msra.mxu0 %v1223
    %1352 = vmatprep.subr.mxu0 0.0
    %1353 = vmatpush1.msra.mxu0 %v1220
    %1354 = vmatprep.subr.mxu0 0.0
    %1355 = vmatpush1.msra.mxu0 %v1217
    %1356 = vmatprep.subr.mxu0 0.0
    %1357 = vmatpush1.msra.mxu0 %v1214
    %1358 = vmatprep.subr.mxu0 0.0
    %1359 = vmatpush1.msra.mxu0 %v1211
    %1360 = vmatprep.subr.mxu0 0.0
    %1361 = vmatpush2.msra.mxu0 0.0
    %1362 = vmatprep.subr.mxu0 0.0
    %1363 = vmatpush2.msra.mxu0 0.0
    %1364 = vmatprep.subr.mxu0 0.0
    %1365 = vmatpush2.msra.mxu0 0.0
    %1366 = vmatprep.subr.mxu0 0.0
    %1367 = vmatpush2.msra.mxu0 0.0
    %1368 = vmatprep.subr.mxu0 0.0
    %1369 = vmatpush2.msra.mxu0 0.0
    %1370 = vmatprep.subr.mxu0 0.0
    %1371 = vmatpush2.msra.mxu0 0.0
    %1372 = vmatprep.subr.mxu0 0.0
    %1373 = vmatpush2.msra.mxu0 0.0
    %1374 = vmatprep.subr.mxu0 0.0
    %1375 = vmatpush2.msra.mxu0 0.0
    %1376 = vmatprep.subr.mxu0 0.0
    %1377 = vmatpush2.msra.mxu0 0.0
    %1378 = vmatprep.subr.mxu0 0.0
    %1379 = vmatpush2.msra.mxu0 0.0
    %1380 = vmatprep.subr.mxu0 0.0
    %1381 = vmatpush2.msra.mxu0 0.0
    %1382 = vmatprep.subr.mxu0 0.0
    %1383 = vmatpush2.msra.mxu0 0.0
    %1384 = vmatprep.subr.mxu0 0.0
    %1385 = vmatpush2.msra.mxu0 0.0
    %1386 = vmatprep.subr.mxu0 0.0
    %1387 = vmatpush2.msra.mxu0 0.0
    %1388 = vmatprep.subr.mxu0 0.0
    %1389 = vmatpush2.msra.mxu0 0.0
    %1390 = vmatprep.subr.mxu0 0.0
    %1391 = vmatpush2.msra.mxu0 0.0
    %1392 = vmatprep.mubr.f32.mxu0 0.0
    %1393 = vmatmul.mubr.f32.gmra.mxu0 %v1205
    %v1394 = vpop.f32.mrf.mxu0
    %v1395 = vadd.f32 0.0, %v1394
    %v1396 = vpop.f32.mrf.mxu0
    %1397 = vdwg.mxu0
    %v1398 = vadd.f32 %v1208, %v1324
    %v1399 = vxor.u32 %v1398, 2147483648
    %v1400 = vmul.f32 %v1399, 1.442695
    %v1401 = vpow.pop %v1400
    %v1402 = vadd.f32 %v1401, 1.0
    %v1403 = vrcp.pop %v1402
    %v1404 = vmul.f32 1.0, %v1403
    %v1406 = vrot.slane %v1208, 1
    %v1408 = vadd.f32 %v1406, %v1326
    %v1409 = vxor.u32 %v1408, 2147483648
    %v1410 = vmul.f32 %v1409, 1.442695
    %v1411 = vpow.pop %v1410
    %v1412 = vadd.f32 %v1411, 1.0
    %v1413 = vrcp.pop %v1412
    %v1414 = vmul.f32 1.0, %v1413
    %v1415 = vadd.f32 %v1395, %v330
    %v1416 = vmul.f32 %v1404, %v1415
    %v1417 = vrot.slane %v1208, 2
    %v1419 = vadd.f32 %v1417, %v1416
    %v1420 = vtanh.pop %v1419
    %v1421 = vsub.f32 1.0, %v1414
    %v1422 = vmul.f32 %v1421, %v1420
    %v1423 = vmul.f32 %v1414, %v1205
    %v1424 = vadd.f32 %v1422, %v1423
    %1425 = vst [vmem:[#allocation9 + $0x4] sm:$0x1] %v1424
    %s1426 = scalar_lea.vmem [#allocation2], 5
    %v1427 = vld [vmem:[%s1426] ss:$8 sm:$0x7]
    %v1428 = vld [vmem:[#allocation8] sm:$0xff]
    %v1429 = vld [vmem:[#allocation8 + $0x8] sm:$0xff]
    %v1430 = vld [vmem:[#allocation8 + $0x10] sm:$0xff]
    %v1431 = vld [vmem:[#allocation8 + $0x18] sm:$0xff]
    %v1432 = vld [vmem:[#allocation8 + $0x20] sm:$0xff]
    %v1433 = vld [vmem:[#allocation8 + $0x28] sm:$0xff]
    %v1434 = vld [vmem:[#allocation8 + $0x30] sm:$0xff]
    %v1435 = vld [vmem:[#allocation8 + $0x38] sm:$0xff]
    %v1436 = vld [vmem:[#allocation8 + $0x40] sm:$0xff]
    %v1437 = vld [vmem:[#allocation8 + $0x48] sm:$0xff]
    %v1438 = vld [vmem:[#allocation8 + $0x50] sm:$0xff]
    %v1439 = vld [vmem:[#allocation8 + $0x58] sm:$0xff]
    %v1440 = vld [vmem:[#allocation8 + $0x60] sm:$0xff]
    %v1441 = vld [vmem:[#allocation8 + $0x68] sm:$0xff]
    %v1442 = vld [vmem:[#allocation8 + $0x70] sm:$0xff]
    %v1443 = vld [vmem:[#allocation8 + $0x78] sm:$0xff]
    %v1444 = vld [vmem:[#allocation8 + $0x80] sm:$0xff]
    %v1445 = vld [vmem:[#allocation8 + $0x88] sm:$0xff]
    %v1446 = vld [vmem:[#allocation8 + $0x90] sm:$0xff]
    %v1447 = vld [vmem:[#allocation8 + $0x98] sm:$0xff]
    %v1448 = vld [vmem:[#allocation8 + $0xa0] sm:$0xff]
    %v1449 = vld [vmem:[#allocation8 + $0xa8] sm:$0xff]
    %v1450 = vld [vmem:[#allocation8 + $0xb0] sm:$0xff]
    %v1451 = vld [vmem:[#allocation8 + $0xb8] sm:$0xff]
    %v1452 = vld [vmem:[#allocation8 + $0xc0] sm:$0xff]
    %v1453 = vld [vmem:[#allocation8 + $0xc8] sm:$0xff]
    %v1454 = vld [vmem:[#allocation8 + $0xd0] sm:$0xff]
    %v1455 = vld [vmem:[#allocation8 + $0xd8] sm:$0xff]
    %v1456 = vld [vmem:[#allocation8 + $0xe0] sm:$0xff]
    %v1457 = vld [vmem:[#allocation8 + $0xe8] sm:$0xff]
    %v1458 = vld [vmem:[#allocation8 + $0xf0] sm:$0xff]
    %v1459 = vld [vmem:[#allocation8 + $0xf8] sm:$0xff]
    %v1460 = vld [vmem:[#allocation8 + $0x100] sm:$0xff]
    %v1461 = vld [vmem:[#allocation8 + $0x108] sm:$0xff]
    %v1462 = vld [vmem:[#allocation8 + $0x110] sm:$0xff]
    %v1463 = vld [vmem:[#allocation8 + $0x118] sm:$0xff]
    %v1464 = vld [vmem:[#allocation8 + $0x120] sm:$0xff]
    %v1465 = vld [vmem:[#allocation8 + $0x128] sm:$0xff]
    %v1466 = vld [vmem:[#allocation8 + $0x130] sm:$0xff]
    %v1467 = vld [vmem:[#allocation8 + $0x138] sm:$0xff]
    %v1468 = vld [vmem:[#allocation8 + $0x140] sm:$0xff]
    %v1469 = vld [vmem:[#allocation8 + $0x148] sm:$0xff]
    %v1470 = vld [vmem:[#allocation8 + $0x150] sm:$0xff]
    %v1471 = vld [vmem:[#allocation8 + $0x158] sm:$0xff]
    %v1472 = vld [vmem:[#allocation8 + $0x160] sm:$0xff]
    %v1473 = vld [vmem:[#allocation8 + $0x168] sm:$0xff]
    %v1474 = vld [vmem:[#allocation8 + $0x170] sm:$0xff]
    %v1475 = vld [vmem:[#allocation8 + $0x178] sm:$0xff]
    %1476 = vmatprep.subr.mxu0 %v1474
    %1477 = vmatpush1.msra.mxu0 %v1473
    %1478 = vmatprep.subr.mxu0 %v1471
    %1479 = vmatpush1.msra.mxu0 %v1470
    %1480 = vmatprep.subr.mxu0 %v1468
    %1481 = vmatpush1.msra.mxu0 %v1467
    %1482 = vmatprep.subr.mxu0 %v1465
    %1483 = vmatpush1.msra.mxu0 %v1464
    %1484 = vmatprep.subr.mxu0 %v1462
    %1485 = vmatpush1.msra.mxu0 %v1461
    %1486 = vmatprep.subr.mxu0 %v1459
    %1487 = vmatpush1.msra.mxu0 %v1458
    %1488 = vmatprep.subr.mxu0 %v1456
    %1489 = vmatpush1.msra.mxu0 %v1455
    %1490 = vmatprep.subr.mxu0 %v1453
    %1491 = vmatpush1.msra.mxu0 %v1452
    %1492 = vmatprep.subr.mxu0 %v1450
    %1493 = vmatpush1.msra.mxu0 %v1449
    %1494 = vmatprep.subr.mxu0 %v1447
    %1495 = vmatpush1.msra.mxu0 %v1446
    %1496 = vmatprep.subr.mxu0 %v1444
    %1497 = vmatpush1.msra.mxu0 %v1443
    %1498 = vmatprep.subr.mxu0 %v1441
    %1499 = vmatpush1.msra.mxu0 %v1440
    %1500 = vmatprep.subr.mxu0 %v1438
    %1501 = vmatpush1.msra.mxu0 %v1437
    %1502 = vmatprep.subr.mxu0 %v1435
    %1503 = vmatpush1.msra.mxu0 %v1434
    %1504 = vmatprep.subr.mxu0 %v1432
    %1505 = vmatpush1.msra.mxu0 %v1431
    %1506 = vmatprep.subr.mxu0 %v1429
    %1507 = vmatpush1.msra.mxu0 %v1428
    %1508 = vmatprep.subr.mxu0 0.0
    %1509 = vmatpush2.msra.mxu0 0.0
    %1510 = vmatprep.subr.mxu0 0.0
    %1511 = vmatpush2.msra.mxu0 0.0
    %1512 = vmatprep.subr.mxu0 0.0
    %1513 = vmatpush2.msra.mxu0 0.0
    %1514 = vmatprep.subr.mxu0 0.0
    %1515 = vmatpush2.msra.mxu0 0.0
    %1516 = vmatprep.subr.mxu0 0.0
    %1517 = vmatpush2.msra.mxu0 0.0
    %1518 = vmatprep.subr.mxu0 0.0
    %1519 = vmatpush2.msra.mxu0 0.0
    %1520 = vmatprep.subr.mxu0 0.0
    %1521 = vmatpush2.msra.mxu0 0.0
    %1522 = vmatprep.subr.mxu0 0.0
    %1523 = vmatpush2.msra.mxu0 0.0
    %1524 = vmatprep.subr.mxu0 0.0
    %1525 = vmatpush2.msra.mxu0 0.0
    %1526 = vmatprep.subr.mxu0 0.0
    %1527 = vmatpush2.msra.mxu0 0.0
    %1528 = vmatprep.subr.mxu0 0.0
    %1529 = vmatpush2.msra.mxu0 0.0
    %1530 = vmatprep.subr.mxu0 0.0
    %1531 = vmatpush2.msra.mxu0 0.0
    %1532 = vmatprep.subr.mxu0 0.0
    %1533 = vmatpush2.msra.mxu0 0.0
    %1534 = vmatprep.subr.mxu0 0.0
    %1535 = vmatpush2.msra.mxu0 0.0
    %1536 = vmatprep.subr.mxu0 0.0
    %1537 = vmatpush2.msra.mxu0 0.0
    %1538 = vmatprep.subr.mxu0 0.0
    %1539 = vmatpush2.msra.mxu0 0.0
    %1540 = vmatprep.mubr.f32.mxu0 0.0
    %1541 = vmatmul.mubr.f32.gmra.mxu0 %v1424
    %v1542 = vpop.f32.mrf.mxu0
    %v1543 = vadd.f32 0.0, %v1542
    %v1544 = vpop.f32.mrf.mxu0
    %v1545 = vadd.f32 0.0, %v1544
    %1546 = vdwg.mxu0
    %1547 = vmatprep.subr.mxu0 0.0
    %1548 = vmatpush1.msra.mxu0 %v1475
    %1549 = vmatprep.subr.mxu0 0.0
    %1550 = vmatpush1.msra.mxu0 %v1472
    %1551 = vmatprep.subr.mxu0 0.0
    %1552 = vmatpush1.msra.mxu0 %v1469
    %1553 = vmatprep.subr.mxu0 0.0
    %1554 = vmatpush1.msra.mxu0 %v1466
    %1555 = vmatprep.subr.mxu0 0.0
    %1556 = vmatpush1.msra.mxu0 %v1463
    %1557 = vmatprep.subr.mxu0 0.0
    %1558 = vmatpush1.msra.mxu0 %v1460
    %1559 = vmatprep.subr.mxu0 0.0
    %1560 = vmatpush1.msra.mxu0 %v1457
    %1561 = vmatprep.subr.mxu0 0.0
    %1562 = vmatpush1.msra.mxu0 %v1454
    %1563 = vmatprep.subr.mxu0 0.0
    %1564 = vmatpush1.msra.mxu0 %v1451
    %1565 = vmatprep.subr.mxu0 0.0
    %1566 = vmatpush1.msra.mxu0 %v1448
    %1567 = vmatprep.subr.mxu0 0.0
    %1568 = vmatpush1.msra.mxu0 %v1445
    %1569 = vmatprep.subr.mxu0 0.0
    %1570 = vmatpush1.msra.mxu0 %v1442
    %1571 = vmatprep.subr.mxu0 0.0
    %1572 = vmatpush1.msra.mxu0 %v1439
    %1573 = vmatprep.subr.mxu0 0.0
    %1574 = vmatpush1.msra.mxu0 %v1436
    %1575 = vmatprep.subr.mxu0 0.0
    %1576 = vmatpush1.msra.mxu0 %v1433
    %1577 = vmatprep.subr.mxu0 0.0
    %1578 = vmatpush1.msra.mxu0 %v1430
    %1579 = vmatprep.subr.mxu0 0.0
    %1580 = vmatpush2.msra.mxu0 0.0
    %1581 = vmatprep.subr.mxu0 0.0
    %1582 = vmatpush2.msra.mxu0 0.0
    %1583 = vmatprep.subr.mxu0 0.0
    %1584 = vmatpush2.msra.mxu0 0.0
    %1585 = vmatprep.subr.mxu0 0.0
    %1586 = vmatpush2.msra.mxu0 0.0
    %1587 = vmatprep.subr.mxu0 0.0
    %1588 = vmatpush2.msra.mxu0 0.0
    %1589 = vmatprep.subr.mxu0 0.0
    %1590 = vmatpush2.msra.mxu0 0.0
    %1591 = vmatprep.subr.mxu0 0.0
    %1592 = vmatpush2.msra.mxu0 0.0
    %1593 = vmatprep.subr.mxu0 0.0
    %1594 = vmatpush2.msra.mxu0 0.0
    %1595 = vmatprep.subr.mxu0 0.0
    %1596 = vmatpush2.msra.mxu0 0.0
    %1597 = vmatprep.subr.mxu0 0.0
    %1598 = vmatpush2.msra.mxu0 0.0
    %1599 = vmatprep.subr.mxu0 0.0
    %1600 = vmatpush2.msra.mxu0 0.0
    %1601 = vmatprep.subr.mxu0 0.0
    %1602 = vmatpush2.msra.mxu0 0.0
    %1603 = vmatprep.subr.mxu0 0.0
    %1604 = vmatpush2.msra.mxu0 0.0
    %1605 = vmatprep.subr.mxu0 0.0
    %1606 = vmatpush2.msra.mxu0 0.0
    %1607 = vmatprep.subr.mxu0 0.0
    %1608 = vmatpush2.msra.mxu0 0.0
    %1609 = vmatprep.subr.mxu0 0.0
    %1610 = vmatpush2.msra.mxu0 0.0
    %1611 = vmatprep.mubr.f32.mxu0 0.0
    %1612 = vmatmul.mubr.f32.gmra.mxu0 %v1424
    %v1613 = vpop.f32.mrf.mxu0
    %v1614 = vadd.f32 0.0, %v1613
    %v1615 = vpop.f32.mrf.mxu0
    %1616 = vdwg.mxu0
    %v1617 = vadd.f32 %v1427, %v1543
    %v1618 = vxor.u32 %v1617, 2147483648
    %v1619 = vmul.f32 %v1618, 1.442695
    %v1620 = vpow.pop %v1619
    %v1621 = vadd.f32 %v1620, 1.0
    %v1622 = vrcp.pop %v1621
    %v1623 = vmul.f32 1.0, %v1622
    %v1625 = vrot.slane %v1427, 1
    %v1627 = vadd.f32 %v1625, %v1545
    %v1628 = vxor.u32 %v1627, 2147483648
    %v1629 = vmul.f32 %v1628, 1.442695
    %v1630 = vpow.pop %v1629
    %v1631 = vadd.f32 %v1630, 1.0
    %v1632 = vrcp.pop %v1631
    %v1633 = vmul.f32 1.0, %v1632
    %v1634 = vadd.f32 %v1614, %v330
    %v1635 = vmul.f32 %v1623, %v1634
    %v1636 = vrot.slane %v1427, 2
    %v1638 = vadd.f32 %v1636, %v1635
    %v1639 = vtanh.pop %v1638
    %v1640 = vsub.f32 1.0, %v1633
    %v1641 = vmul.f32 %v1640, %v1639
    %v1642 = vmul.f32 %v1633, %v1424
    %v1643 = vadd.f32 %v1641, %v1642
    %1644 = vst [vmem:[#allocation9 + $0x5] sm:$0x1] %v1643
    %s1645 = scalar_lea.vmem [#allocation2], 6
    %v1646 = vld [vmem:[%s1645] ss:$8 sm:$0x7]
    %v1647 = vld [vmem:[#allocation8] sm:$0xff]
    %v1648 = vld [vmem:[#allocation8 + $0x8] sm:$0xff]
    %v1649 = vld [vmem:[#allocation8 + $0x10] sm:$0xff]
    %v1650 = vld [vmem:[#allocation8 + $0x18] sm:$0xff]
    %v1651 = vld [vmem:[#allocation8 + $0x20] sm:$0xff]
    %v1652 = vld [vmem:[#allocation8 + $0x28] sm:$0xff]
    %v1653 = vld [vmem:[#allocation8 + $0x30] sm:$0xff]
    %v1654 = vld [vmem:[#allocation8 + $0x38] sm:$0xff]
    %v1655 = vld [vmem:[#allocation8 + $0x40] sm:$0xff]
    %v1656 = vld [vmem:[#allocation8 + $0x48] sm:$0xff]
    %v1657 = vld [vmem:[#allocation8 + $0x50] sm:$0xff]
    %v1658 = vld [vmem:[#allocation8 + $0x58] sm:$0xff]
    %v1659 = vld [vmem:[#allocation8 + $0x60] sm:$0xff]
    %v1660 = vld [vmem:[#allocation8 + $0x68] sm:$0xff]
    %v1661 = vld [vmem:[#allocation8 + $0x70] sm:$0xff]
    %v1662 = vld [vmem:[#allocation8 + $0x78] sm:$0xff]
    %v1663 = vld [vmem:[#allocation8 + $0x80] sm:$0xff]
    %v1664 = vld [vmem:[#allocation8 + $0x88] sm:$0xff]
    %v1665 = vld [vmem:[#allocation8 + $0x90] sm:$0xff]
    %v1666 = vld [vmem:[#allocation8 + $0x98] sm:$0xff]
    %v1667 = vld [vmem:[#allocation8 + $0xa0] sm:$0xff]
    %v1668 = vld [vmem:[#allocation8 + $0xa8] sm:$0xff]
    %v1669 = vld [vmem:[#allocation8 + $0xb0] sm:$0xff]
    %v1670 = vld [vmem:[#allocation8 + $0xb8] sm:$0xff]
    %v1671 = vld [vmem:[#allocation8 + $0xc0] sm:$0xff]
    %v1672 = vld [vmem:[#allocation8 + $0xc8] sm:$0xff]
    %v1673 = vld [vmem:[#allocation8 + $0xd0] sm:$0xff]
    %v1674 = vld [vmem:[#allocation8 + $0xd8] sm:$0xff]
    %v1675 = vld [vmem:[#allocation8 + $0xe0] sm:$0xff]
    %v1676 = vld [vmem:[#allocation8 + $0xe8] sm:$0xff]
    %v1677 = vld [vmem:[#allocation8 + $0xf0] sm:$0xff]
    %v1678 = vld [vmem:[#allocation8 + $0xf8] sm:$0xff]
    %v1679 = vld [vmem:[#allocation8 + $0x100] sm:$0xff]
    %v1680 = vld [vmem:[#allocation8 + $0x108] sm:$0xff]
    %v1681 = vld [vmem:[#allocation8 + $0x110] sm:$0xff]
    %v1682 = vld [vmem:[#allocation8 + $0x118] sm:$0xff]
    %v1683 = vld [vmem:[#allocation8 + $0x120] sm:$0xff]
    %v1684 = vld [vmem:[#allocation8 + $0x128] sm:$0xff]
    %v1685 = vld [vmem:[#allocation8 + $0x130] sm:$0xff]
    %v1686 = vld [vmem:[#allocation8 + $0x138] sm:$0xff]
    %v1687 = vld [vmem:[#allocation8 + $0x140] sm:$0xff]
    %v1688 = vld [vmem:[#allocation8 + $0x148] sm:$0xff]
    %v1689 = vld [vmem:[#allocation8 + $0x150] sm:$0xff]
    %v1690 = vld [vmem:[#allocation8 + $0x158] sm:$0xff]
    %v1691 = vld [vmem:[#allocation8 + $0x160] sm:$0xff]
    %v1692 = vld [vmem:[#allocation8 + $0x168] sm:$0xff]
    %v1693 = vld [vmem:[#allocation8 + $0x170] sm:$0xff]
    %v1694 = vld [vmem:[#allocation8 + $0x178] sm:$0xff]
    %1695 = vmatprep.subr.mxu0 %v1693
    %1696 = vmatpush1.msra.mxu0 %v1692
    %1697 = vmatprep.subr.mxu0 %v1690
    %1698 = vmatpush1.msra.mxu0 %v1689
    %1699 = vmatprep.subr.mxu0 %v1687
    %1700 = vmatpush1.msra.mxu0 %v1686
    %1701 = vmatprep.subr.mxu0 %v1684
    %1702 = vmatpush1.msra.mxu0 %v1683
    %1703 = vmatprep.subr.mxu0 %v1681
    %1704 = vmatpush1.msra.mxu0 %v1680
    %1705 = vmatprep.subr.mxu0 %v1678
    %1706 = vmatpush1.msra.mxu0 %v1677
    %1707 = vmatprep.subr.mxu0 %v1675
    %1708 = vmatpush1.msra.mxu0 %v1674
    %1709 = vmatprep.subr.mxu0 %v1672
    %1710 = vmatpush1.msra.mxu0 %v1671
    %1711 = vmatprep.subr.mxu0 %v1669
    %1712 = vmatpush1.msra.mxu0 %v1668
    %1713 = vmatprep.subr.mxu0 %v1666
    %1714 = vmatpush1.msra.mxu0 %v1665
    %1715 = vmatprep.subr.mxu0 %v1663
    %1716 = vmatpush1.msra.mxu0 %v1662
    %1717 = vmatprep.subr.mxu0 %v1660
    %1718 = vmatpush1.msra.mxu0 %v1659
    %1719 = vmatprep.subr.mxu0 %v1657
    %1720 = vmatpush1.msra.mxu0 %v1656
    %1721 = vmatprep.subr.mxu0 %v1654
    %1722 = vmatpush1.msra.mxu0 %v1653
    %1723 = vmatprep.subr.mxu0 %v1651
    %1724 = vmatpush1.msra.mxu0 %v1650
    %1725 = vmatprep.subr.mxu0 %v1648
    %1726 = vmatpush1.msra.mxu0 %v1647
    %1727 = vmatprep.subr.mxu0 0.0
    %1728 = vmatpush2.msra.mxu0 0.0
    %1729 = vmatprep.subr.mxu0 0.0
    %1730 = vmatpush2.msra.mxu0 0.0
    %1731 = vmatprep.subr.mxu0 0.0
    %1732 = vmatpush2.msra.mxu0 0.0
    %1733 = vmatprep.subr.mxu0 0.0
    %1734 = vmatpush2.msra.mxu0 0.0
    %1735 = vmatprep.subr.mxu0 0.0
    %1736 = vmatpush2.msra.mxu0 0.0
    %1737 = vmatprep.subr.mxu0 0.0
    %1738 = vmatpush2.msra.mxu0 0.0
    %1739 = vmatprep.subr.mxu0 0.0
    %1740 = vmatpush2.msra.mxu0 0.0
    %1741 = vmatprep.subr.mxu0 0.0
    %1742 = vmatpush2.msra.mxu0 0.0
    %1743 = vmatprep.subr.mxu0 0.0
    %1744 = vmatpush2.msra.mxu0 0.0
    %1745 = vmatprep.subr.mxu0 0.0
    %1746 = vmatpush2.msra.mxu0 0.0
    %1747 = vmatprep.subr.mxu0 0.0
    %1748 = vmatpush2.msra.mxu0 0.0
    %1749 = vmatprep.subr.mxu0 0.0
    %1750 = vmatpush2.msra.mxu0 0.0
    %1751 = vmatprep.subr.mxu0 0.0
    %1752 = vmatpush2.msra.mxu0 0.0
    %1753 = vmatprep.subr.mxu0 0.0
    %1754 = vmatpush2.msra.mxu0 0.0
    %1755 = vmatprep.subr.mxu0 0.0
    %1756 = vmatpush2.msra.mxu0 0.0
    %1757 = vmatprep.subr.mxu0 0.0
    %1758 = vmatpush2.msra.mxu0 0.0
    %1759 = vmatprep.mubr.f32.mxu0 0.0
    %1760 = vmatmul.mubr.f32.gmra.mxu0 %v1643
    %v1761 = vpop.f32.mrf.mxu0
    %v1762 = vadd.f32 0.0, %v1761
    %v1763 = vpop.f32.mrf.mxu0
    %v1764 = vadd.f32 0.0, %v1763
    %1765 = vdwg.mxu0
    %1766 = vmatprep.subr.mxu0 0.0
    %1767 = vmatpush1.msra.mxu0 %v1694
    %1768 = vmatprep.subr.mxu0 0.0
    %1769 = vmatpush1.msra.mxu0 %v1691
    %1770 = vmatprep.subr.mxu0 0.0
    %1771 = vmatpush1.msra.mxu0 %v1688
    %1772 = vmatprep.subr.mxu0 0.0
    %1773 = vmatpush1.msra.mxu0 %v1685
    %1774 = vmatprep.subr.mxu0 0.0
    %1775 = vmatpush1.msra.mxu0 %v1682
    %1776 = vmatprep.subr.mxu0 0.0
    %1777 = vmatpush1.msra.mxu0 %v1679
    %1778 = vmatprep.subr.mxu0 0.0
    %1779 = vmatpush1.msra.mxu0 %v1676
    %1780 = vmatprep.subr.mxu0 0.0
    %1781 = vmatpush1.msra.mxu0 %v1673
    %1782 = vmatprep.subr.mxu0 0.0
    %1783 = vmatpush1.msra.mxu0 %v1670
    %1784 = vmatprep.subr.mxu0 0.0
    %1785 = vmatpush1.msra.mxu0 %v1667
    %1786 = vmatprep.subr.mxu0 0.0
    %1787 = vmatpush1.msra.mxu0 %v1664
    %1788 = vmatprep.subr.mxu0 0.0
    %1789 = vmatpush1.msra.mxu0 %v1661
    %1790 = vmatprep.subr.mxu0 0.0
    %1791 = vmatpush1.msra.mxu0 %v1658
    %1792 = vmatprep.subr.mxu0 0.0
    %1793 = vmatpush1.msra.mxu0 %v1655
    %1794 = vmatprep.subr.mxu0 0.0
    %1795 = vmatpush1.msra.mxu0 %v1652
    %1796 = vmatprep.subr.mxu0 0.0
    %1797 = vmatpush1.msra.mxu0 %v1649
    %1798 = vmatprep.subr.mxu0 0.0
    %1799 = vmatpush2.msra.mxu0 0.0
    %1800 = vmatprep.subr.mxu0 0.0
    %1801 = vmatpush2.msra.mxu0 0.0
    %1802 = vmatprep.subr.mxu0 0.0
    %1803 = vmatpush2.msra.mxu0 0.0
    %1804 = vmatprep.subr.mxu0 0.0
    %1805 = vmatpush2.msra.mxu0 0.0
    %1806 = vmatprep.subr.mxu0 0.0
    %1807 = vmatpush2.msra.mxu0 0.0
    %1808 = vmatprep.subr.mxu0 0.0
    %1809 = vmatpush2.msra.mxu0 0.0
    %1810 = vmatprep.subr.mxu0 0.0
    %1811 = vmatpush2.msra.mxu0 0.0
    %1812 = vmatprep.subr.mxu0 0.0
    %1813 = vmatpush2.msra.mxu0 0.0
    %1814 = vmatprep.subr.mxu0 0.0
    %1815 = vmatpush2.msra.mxu0 0.0
    %1816 = vmatprep.subr.mxu0 0.0
    %1817 = vmatpush2.msra.mxu0 0.0
    %1818 = vmatprep.subr.mxu0 0.0
    %1819 = vmatpush2.msra.mxu0 0.0
    %1820 = vmatprep.subr.mxu0 0.0
    %1821 = vmatpush2.msra.mxu0 0.0
    %1822 = vmatprep.subr.mxu0 0.0
    %1823 = vmatpush2.msra.mxu0 0.0
    %1824 = vmatprep.subr.mxu0 0.0
    %1825 = vmatpush2.msra.mxu0 0.0
    %1826 = vmatprep.subr.mxu0 0.0
    %1827 = vmatpush2.msra.mxu0 0.0
    %1828 = vmatprep.subr.mxu0 0.0
    %1829 = vmatpush2.msra.mxu0 0.0
    %1830 = vmatprep.mubr.f32.mxu0 0.0
    %1831 = vmatmul.mubr.f32.gmra.mxu0 %v1643
    %v1832 = vpop.f32.mrf.mxu0
    %v1833 = vadd.f32 0.0, %v1832
    %v1834 = vpop.f32.mrf.mxu0
    %1835 = vdwg.mxu0
    %v1836 = vadd.f32 %v1646, %v1762
    %v1837 = vxor.u32 %v1836, 2147483648
    %v1838 = vmul.f32 %v1837, 1.442695
    %v1839 = vpow.pop %v1838
    %v1840 = vadd.f32 %v1839, 1.0
    %v1841 = vrcp.pop %v1840
    %v1842 = vmul.f32 1.0, %v1841
    %v1844 = vrot.slane %v1646, 1
    %v1846 = vadd.f32 %v1844, %v1764
    %v1847 = vxor.u32 %v1846, 2147483648
    %v1848 = vmul.f32 %v1847, 1.442695
    %v1849 = vpow.pop %v1848
    %v1850 = vadd.f32 %v1849, 1.0
    %v1851 = vrcp.pop %v1850
    %v1852 = vmul.f32 1.0, %v1851
    %v1853 = vadd.f32 %v1833, %v330
    %v1854 = vmul.f32 %v1842, %v1853
    %v1855 = vrot.slane %v1646, 2
    %v1857 = vadd.f32 %v1855, %v1854
    %v1858 = vtanh.pop %v1857
    %v1859 = vsub.f32 1.0, %v1852
    %v1860 = vmul.f32 %v1859, %v1858
    %v1861 = vmul.f32 %v1852, %v1643
    %v1862 = vadd.f32 %v1860, %v1861
    %1863 = vst [vmem:[#allocation9 + $0x6] sm:$0x1] %v1862
    %s1864 = scalar_lea.vmem [#allocation2], 7
    %v1865 = vld [vmem:[%s1864] ss:$8 sm:$0x7]
    %v1866 = vld [vmem:[#allocation8] sm:$0xff]
    %v1867 = vld [vmem:[#allocation8 + $0x8] sm:$0xff]
    %v1868 = vld [vmem:[#allocation8 + $0x10] sm:$0xff]
    %v1869 = vld [vmem:[#allocation8 + $0x18] sm:$0xff]
    %v1870 = vld [vmem:[#allocation8 + $0x20] sm:$0xff]
    %v1871 = vld [vmem:[#allocation8 + $0x28] sm:$0xff]
    %v1872 = vld [vmem:[#allocation8 + $0x30] sm:$0xff]
    %v1873 = vld [vmem:[#allocation8 + $0x38] sm:$0xff]
    %v1874 = vld [vmem:[#allocation8 + $0x40] sm:$0xff]
    %v1875 = vld [vmem:[#allocation8 + $0x48] sm:$0xff]
    %v1876 = vld [vmem:[#allocation8 + $0x50] sm:$0xff]
    %v1877 = vld [vmem:[#allocation8 + $0x58] sm:$0xff]
    %v1878 = vld [vmem:[#allocation8 + $0x60] sm:$0xff]
    %v1879 = vld [vmem:[#allocation8 + $0x68] sm:$0xff]
    %v1880 = vld [vmem:[#allocation8 + $0x70] sm:$0xff]
    %v1881 = vld [vmem:[#allocation8 + $0x78] sm:$0xff]
    %v1882 = vld [vmem:[#allocation8 + $0x80] sm:$0xff]
    %v1883 = vld [vmem:[#allocation8 + $0x88] sm:$0xff]
    %v1884 = vld [vmem:[#allocation8 + $0x90] sm:$0xff]
    %v1885 = vld [vmem:[#allocation8 + $0x98] sm:$0xff]
    %v1886 = vld [vmem:[#allocation8 + $0xa0] sm:$0xff]
    %v1887 = vld [vmem:[#allocation8 + $0xa8] sm:$0xff]
    %v1888 = vld [vmem:[#allocation8 + $0xb0] sm:$0xff]
    %v1889 = vld [vmem:[#allocation8 + $0xb8] sm:$0xff]
    %v1890 = vld [vmem:[#allocation8 + $0xc0] sm:$0xff]
    %v1891 = vld [vmem:[#allocation8 + $0xc8] sm:$0xff]
    %v1892 = vld [vmem:[#allocation8 + $0xd0] sm:$0xff]
    %v1893 = vld [vmem:[#allocation8 + $0xd8] sm:$0xff]
    %v1894 = vld [vmem:[#allocation8 + $0xe0] sm:$0xff]
    %v1895 = vld [vmem:[#allocation8 + $0xe8] sm:$0xff]
    %v1896 = vld [vmem:[#allocation8 + $0xf0] sm:$0xff]
    %v1897 = vld [vmem:[#allocation8 + $0xf8] sm:$0xff]
    %v1898 = vld [vmem:[#allocation8 + $0x100] sm:$0xff]
    %v1899 = vld [vmem:[#allocation8 + $0x108] sm:$0xff]
    %v1900 = vld [vmem:[#allocation8 + $0x110] sm:$0xff]
    %v1901 = vld [vmem:[#allocation8 + $0x118] sm:$0xff]
    %v1902 = vld [vmem:[#allocation8 + $0x120] sm:$0xff]
    %v1903 = vld [vmem:[#allocation8 + $0x128] sm:$0xff]
    %v1904 = vld [vmem:[#allocation8 + $0x130] sm:$0xff]
    %v1905 = vld [vmem:[#allocation8 + $0x138] sm:$0xff]
    %v1906 = vld [vmem:[#allocation8 + $0x140] sm:$0xff]
    %v1907 = vld [vmem:[#allocation8 + $0x148] sm:$0xff]
    %v1908 = vld [vmem:[#allocation8 + $0x150] sm:$0xff]
    %v1909 = vld [vmem:[#allocation8 + $0x158] sm:$0xff]
    %v1910 = vld [vmem:[#allocation8 + $0x160] sm:$0xff]
    %v1911 = vld [vmem:[#allocation8 + $0x168] sm:$0xff]
    %v1912 = vld [vmem:[#allocation8 + $0x170] sm:$0xff]
    %v1913 = vld [vmem:[#allocation8 + $0x178] sm:$0xff]
    %1914 = vmatprep.subr.mxu0 %v1912
    %1915 = vmatpush1.msra.mxu0 %v1911
    %1916 = vmatprep.subr.mxu0 %v1909
    %1917 = vmatpush1.msra.mxu0 %v1908
    %1918 = vmatprep.subr.mxu0 %v1906
    %1919 = vmatpush1.msra.mxu0 %v1905
    %1920 = vmatprep.subr.mxu0 %v1903
    %1921 = vmatpush1.msra.mxu0 %v1902
    %1922 = vmatprep.subr.mxu0 %v1900
    %1923 = vmatpush1.msra.mxu0 %v1899
    %1924 = vmatprep.subr.mxu0 %v1897
    %1925 = vmatpush1.msra.mxu0 %v1896
    %1926 = vmatprep.subr.mxu0 %v1894
    %1927 = vmatpush1.msra.mxu0 %v1893
    %1928 = vmatprep.subr.mxu0 %v1891
    %1929 = vmatpush1.msra.mxu0 %v1890
    %1930 = vmatprep.subr.mxu0 %v1888
    %1931 = vmatpush1.msra.mxu0 %v1887
    %1932 = vmatprep.subr.mxu0 %v1885
    %1933 = vmatpush1.msra.mxu0 %v1884
    %1934 = vmatprep.subr.mxu0 %v1882
    %1935 = vmatpush1.msra.mxu0 %v1881
    %1936 = vmatprep.subr.mxu0 %v1879
    %1937 = vmatpush1.msra.mxu0 %v1878
    %1938 = vmatprep.subr.mxu0 %v1876
    %1939 = vmatpush1.msra.mxu0 %v1875
    %1940 = vmatprep.subr.mxu0 %v1873
    %1941 = vmatpush1.msra.mxu0 %v1872
    %1942 = vmatprep.subr.mxu0 %v1870
    %1943 = vmatpush1.msra.mxu0 %v1869
    %1944 = vmatprep.subr.mxu0 %v1867
    %1945 = vmatpush1.msra.mxu0 %v1866
    %1946 = vmatprep.subr.mxu0 0.0
    %1947 = vmatpush2.msra.mxu0 0.0
    %1948 = vmatprep.subr.mxu0 0.0
    %1949 = vmatpush2.msra.mxu0 0.0
    %1950 = vmatprep.subr.mxu0 0.0
    %1951 = vmatpush2.msra.mxu0 0.0
    %1952 = vmatprep.subr.mxu0 0.0
    %1953 = vmatpush2.msra.mxu0 0.0
    %1954 = vmatprep.subr.mxu0 0.0
    %1955 = vmatpush2.msra.mxu0 0.0
    %1956 = vmatprep.subr.mxu0 0.0
    %1957 = vmatpush2.msra.mxu0 0.0
    %1958 = vmatprep.subr.mxu0 0.0
    %1959 = vmatpush2.msra.mxu0 0.0
    %1960 = vmatprep.subr.mxu0 0.0
    %1961 = vmatpush2.msra.mxu0 0.0
    %1962 = vmatprep.subr.mxu0 0.0
    %1963 = vmatpush2.msra.mxu0 0.0
    %1964 = vmatprep.subr.mxu0 0.0
    %1965 = vmatpush2.msra.mxu0 0.0
    %1966 = vmatprep.subr.mxu0 0.0
    %1967 = vmatpush2.msra.mxu0 0.0
    %1968 = vmatprep.subr.mxu0 0.0
    %1969 = vmatpush2.msra.mxu0 0.0
    %1970 = vmatprep.subr.mxu0 0.0
    %1971 = vmatpush2.msra.mxu0 0.0
    %1972 = vmatprep.subr.mxu0 0.0
    %1973 = vmatpush2.msra.mxu0 0.0
    %1974 = vmatprep.subr.mxu0 0.0
    %1975 = vmatpush2.msra.mxu0 0.0
    %1976 = vmatprep.subr.mxu0 0.0
    %1977 = vmatpush2.msra.mxu0 0.0
    %1978 = vmatprep.mubr.f32.mxu0 0.0
    %1979 = vmatmul.mubr.f32.gmra.mxu0 %v1862
    %v1980 = vpop.f32.mrf.mxu0
    %v1981 = vadd.f32 0.0, %v1980
    %v1982 = vpop.f32.mrf.mxu0
    %v1983 = vadd.f32 0.0, %v1982
    %1984 = vdwg.mxu0
    %1985 = vmatprep.subr.mxu0 0.0
    %1986 = vmatpush1.msra.mxu0 %v1913
    %1987 = vmatprep.subr.mxu0 0.0
    %1988 = vmatpush1.msra.mxu0 %v1910
    %1989 = vmatprep.subr.mxu0 0.0
    %1990 = vmatpush1.msra.mxu0 %v1907
    %1991 = vmatprep.subr.mxu0 0.0
    %1992 = vmatpush1.msra.mxu0 %v1904
    %1993 = vmatprep.subr.mxu0 0.0
    %1994 = vmatpush1.msra.mxu0 %v1901
    %1995 = vmatprep.subr.mxu0 0.0
    %1996 = vmatpush1.msra.mxu0 %v1898
    %1997 = vmatprep.subr.mxu0 0.0
    %1998 = vmatpush1.msra.mxu0 %v1895
    %1999 = vmatprep.subr.mxu0 0.0
    %2000 = vmatpush1.msra.mxu0 %v1892
    %2001 = vmatprep.subr.mxu0 0.0
    %2002 = vmatpush1.msra.mxu0 %v1889
    %2003 = vmatprep.subr.mxu0 0.0
    %2004 = vmatpush1.msra.mxu0 %v1886
    %2005 = vmatprep.subr.mxu0 0.0
    %2006 = vmatpush1.msra.mxu0 %v1883
    %2007 = vmatprep.subr.mxu0 0.0
    %2008 = vmatpush1.msra.mxu0 %v1880
    %2009 = vmatprep.subr.mxu0 0.0
    %2010 = vmatpush1.msra.mxu0 %v1877
    %2011 = vmatprep.subr.mxu0 0.0
    %2012 = vmatpush1.msra.mxu0 %v1874
    %2013 = vmatprep.subr.mxu0 0.0
    %2014 = vmatpush1.msra.mxu0 %v1871
    %2015 = vmatprep.subr.mxu0 0.0
    %2016 = vmatpush1.msra.mxu0 %v1868
    %2017 = vmatprep.subr.mxu0 0.0
    %2018 = vmatpush2.msra.mxu0 0.0
    %2019 = vmatprep.subr.mxu0 0.0
    %2020 = vmatpush2.msra.mxu0 0.0
    %2021 = vmatprep.subr.mxu0 0.0
    %2022 = vmatpush2.msra.mxu0 0.0
    %2023 = vmatprep.subr.mxu0 0.0
    %2024 = vmatpush2.msra.mxu0 0.0
    %2025 = vmatprep.subr.mxu0 0.0
    %2026 = vmatpush2.msra.mxu0 0.0
    %2027 = vmatprep.subr.mxu0 0.0
    %2028 = vmatpush2.msra.mxu0 0.0
    %2029 = vmatprep.subr.mxu0 0.0
    %2030 = vmatpush2.msra.mxu0 0.0
    %2031 = vmatprep.subr.mxu0 0.0
    %2032 = vmatpush2.msra.mxu0 0.0
    %2033 = vmatprep.subr.mxu0 0.0
    %2034 = vmatpush2.msra.mxu0 0.0
    %2035 = vmatprep.subr.mxu0 0.0
    %2036 = vmatpush2.msra.mxu0 0.0
    %2037 = vmatprep.subr.mxu0 0.0
    %2038 = vmatpush2.msra.mxu0 0.0
    %2039 = vmatprep.subr.mxu0 0.0
    %2040 = vmatpush2.msra.mxu0 0.0
    %2041 = vmatprep.subr.mxu0 0.0
    %2042 = vmatpush2.msra.mxu0 0.0
    %2043 = vmatprep.subr.mxu0 0.0
    %2044 = vmatpush2.msra.mxu0 0.0
    %2045 = vmatprep.subr.mxu0 0.0
    %2046 = vmatpush2.msra.mxu0 0.0
    %2047 = vmatprep.subr.mxu0 0.0
    %2048 = vmatpush2.msra.mxu0 0.0
    %2049 = vmatprep.mubr.f32.mxu0 0.0
    %2050 = vmatmul.mubr.f32.gmra.mxu0 %v1862
    %v2051 = vpop.f32.mrf.mxu0
    %v2052 = vadd.f32 0.0, %v2051
    %v2053 = vpop.f32.mrf.mxu0
    %2054 = vdwg.mxu0
    %v2055 = vadd.f32 %v1865, %v1981
    %v2056 = vxor.u32 %v2055, 2147483648
    %v2057 = vmul.f32 %v2056, 1.442695
    %v2058 = vpow.pop %v2057
    %v2059 = vadd.f32 %v2058, 1.0
    %v2060 = vrcp.pop %v2059
    %v2061 = vmul.f32 1.0, %v2060
    %v2063 = vrot.slane %v1865, 1
    %v2065 = vadd.f32 %v2063, %v1983
    %v2066 = vxor.u32 %v2065, 2147483648
    %v2067 = vmul.f32 %v2066, 1.442695
    %v2068 = vpow.pop %v2067
    %v2069 = vadd.f32 %v2068, 1.0
    %v2070 = vrcp.pop %v2069
    %v2071 = vmul.f32 1.0, %v2070
    %v2072 = vadd.f32 %v2052, %v330
    %v2073 = vmul.f32 %v2061, %v2072
    %v2074 = vrot.slane %v1865, 2
    %v2076 = vadd.f32 %v2074, %v2073
    %v2077 = vtanh.pop %v2076
    %v2078 = vsub.f32 1.0, %v2071
    %v2079 = vmul.f32 %v2078, %v2077
    %v2080 = vmul.f32 %v2071, %v1862
    %v2081 = vadd.f32 %v2079, %v2080
    %2082 = vst [vmem:[#allocation9 + $0x7] sm:$0x1] %v2081
    // Predicated region
    $region42: #{tpu_custom_call.1} parent=1 // pred_check
      _
    $region43: #{tpu_custom_call.1} parent=1 // pred_check_branch
      %2084 = sbr.rel (0) target = $region45
    $region44: #{tpu_custom_call.1} parent=1 // pred_region
      %s2086 = ssub.s32 128, 128
      %2087 = vsyncadd [#allocation5], %s2086
      %s2089 = sshll.u32 [#allocation9], 4
      %s2090 = int_to_ptr.vmem [resolvable:$true] %s2089
      %2092 = dma.vmem_to_hbm [thread:$0]  %s2090, 128, %s7, [#allocation5]
    $region45: #{tpu_custom_call.1} parent=1 // pred_fallthru
      _
    // Predicated region
    $region46: #{tpu_custom_call.1} parent=1 // pred_check
      _
    $region47: #{tpu_custom_call.1} parent=1 // pred_check_branch
      %2094 = sbr.rel (0) target = $region49
    $region48: #{tpu_custom_call.1} parent=1 // pred_region
      %2095 = dma.done [#allocation5], 128
    $region49: #{tpu_custom_call.1} parent=1 // pred_fallthru
      _
    %2096 = vsyncpa [#allocation4], 1
    %2097 = vsyncpa [#allocation7], 1
    %2098 = vsyncpa [#allocation5], 1

</llo_original>
